<compile_context>
chip_gen: v7x
topology: tpu7x:2x2x1
jax: 0.10.0
libtpu: 0.0.40
codegen_flags: <defaults>
</compile_context>

<pallas_src>
import functools

import jax
import jax.numpy as jnp
from jax import lax
from jax.experimental import pallas as pl
from jax.experimental.pallas import tpu as pltpu

LEAKY_SLOPE = 0.01   # nn.LeakyReLU(0.01) and nn.LeakyReLU() both use 0.01
BN_EPS = 0.8         # nn.BatchNorm2d(num_filters, 0.8) -> eps = 0.8

# bf16 MXU operands (f32 accumulate); the bias/BN/LeakyReLU epilogue stays f32.
USE_BF16_MXU = True
MXU_DTYPE = jnp.bfloat16 if USE_BF16_MXU else jnp.float32


def _round_up(x, m):
    return (x + m - 1) // m * m


def _leaky(x):
    return jnp.where(x > 0, x, LEAKY_SLOPE * x)


def _mxu(x):
    return x.astype(MXU_DTYPE)


def _nbytes(arrays):
    return sum(int(a.size) * a.dtype.itemsize for a in arrays)


# ---------------------------------------------------------------------------
# Pallas kernels
# ---------------------------------------------------------------------------
def _conv_pool_kernel(a_ref, w_ref, b_ref, o_ref, *, mo):
    """leaky(maxpool2x2(conv(x))): single matmul over all 4 pool groups
    (stacked along rows), max over the 4 row blocks, bias + leaky after."""
    acc = jnp.dot(a_ref[...], w_ref[...], preferred_element_type=jnp.float32)
    m = jnp.maximum(jnp.maximum(acc[0 * mo:1 * mo], acc[1 * mo:2 * mo]),
                    jnp.maximum(acc[2 * mo:3 * mo], acc[3 * mo:4 * mo]))
    o_ref[...] = _leaky(m + b_ref[...])


def _tail_kernel(x_ref, wd1_ref, b1_ref, g1_ref, be1_ref,
                 wd2_ref, b2_ref, g2_ref, be2_ref,
                 wf1_ref, bf1_ref, wf2_ref, bf2_ref, o_ref,
                 *, n_rows, n_chan, n_groups):
    """ResBlock (dense-folded convs, training-mode BN eps=0.8, residual,
    LeakyReLU) + fc1 + LeakyReLU + fc2, all on an (N, G*C) flat (h,w,c) slab."""
    x = x_ref[...]                                    # (N, G*C) f32
    inv = 1.0 / float(n_rows * n_groups)

    def chan_sum(v):
        # Per-channel sum over N rows and the G spatial column groups,
        # broadcast back onto all G*C columns (XLU lane rolls + sublane sum).
        s = v
        for g in range(1, n_groups):
            s = s + pltpu.roll(v, g * n_chan, 1)
        return jnp.sum(s, axis=0, keepdims=True)

    def bn(acc, gamma, beta):
        mean = chan_sum(acc) * inv
        cen = acc - mean
        var = chan_sum(cen * cen) * inv               # biased training-mode var
        return cen * lax.rsqrt(var + BN_EPS) * gamma + beta

    a1 = jnp.dot(_mxu(x), wd1_ref[...],
                 preferred_element_type=jnp.float32) + b1_ref[...]
    h1 = _leaky(bn(a1, g1_ref[...], be1_ref[...]))
    a2 = jnp.dot(_mxu(h1), wd2_ref[...],
                 preferred_element_type=jnp.float32) + b2_ref[...]
    r = _leaky(x + bn(a2, g2_ref[...], be2_ref[...]))          # residual + leaky
    h = _leaky(jnp.dot(_mxu(r), wf1_ref[...],
                       preferred_element_type=jnp.float32) + bf1_ref[...])
    o_ref[...] = jnp.dot(_mxu(h), wf2_ref[...],
                         preferred_element_type=jnp.float32) + bf2_ref[...]


# ---------------------------------------------------------------------------
# XLA glue: grouped im2col (tiny arrays; model is dispatch-bound)
# ---------------------------------------------------------------------------
def _im2col_pool_grouped(x, k, pad):
    """x: (N,H,W,C) -> (4*N*Ho*Wo, k*k*C).  Row block g=(gy,gx) holds the
    patches of conv-output pixel (2*ho+gy, 2*wo+gx); the 2x2 max-pool becomes a
    max over the 4 row blocks after the matmul.  Requires even H, W."""
    N, H, W, C = x.shape
    Ho, Wo = H // 2, W // 2
    xp = jnp.pad(x, ((0, 0), (pad, pad), (pad, pad), (0, 0)))
    groups = []
    for gy in range(2):
        for gx in range(2):
            taps = [xp[:, gy + dy:gy + dy + H:2, gx + dx:gx + dx + W:2, :]
                    for dy in range(k) for dx in range(k)]
            groups.append(
                jnp.stack(taps, axis=3).reshape(N * Ho * Wo, k * k * C))
    return jnp.concatenate(groups, axis=0)


# ---------------------------------------------------------------------------
# Fused-layer wrappers (grid-less pallas_calls, whole arrays in VMEM)
# ---------------------------------------------------------------------------
def conv_leaky_pool(x, p):
    """Fused Conv2d(stride 1, 'same') + LeakyReLU + MaxPool2d(2,2).
    x: (N,H,W,C) NHWC.  Returns (N*Ho*Wo, 128) with rows (n,ho,wo); columns
    [0:oc] are the pooled activations, the rest are exactly zero."""
    N, H, W, _ = x.shape
    Ho, Wo = H // 2, W // 2
    Mo = N * Ho * Wo
    Kp, Np = p['w'].shape
    a = _im2col_pool_grouped(x.astype(MXU_DTYPE), p['k'], p['pad'])  # (4*Mo, K)
    K = a.shape[1]
    if K != Kp:
        # zero K-pad (fuses with the im2col producer); weight rows >= K are 0
        a = jnp.pad(a, ((0, 0), (0, Kp - K)))
    return pl.pallas_call(
        functools.partial(_conv_pool_kernel, mo=Mo),
        out_shape=jax.ShapeDtypeStruct((Mo, Np), jnp.float32),
        cost_estimate=pl.CostEstimate(
            flops=2 * 4 * Mo * Kp * Np,
            transcendentals=0,
            bytes_accessed=_nbytes([a, p['w'], p['b']]) + Mo * Np * 4),
    )(a, p['w'], p['b'])


def tail_res_fc(x_flat, p):
    """ResBlock + LeakyReLU + flatten + fc1 + LeakyReLU + fc2 in one kernel.
    x_flat: (N, G*C) f32 in (h,w,c) order.  Returns (N, 128); scores in col 0."""
    N, F = x_flat.shape
    Hp = p['wf1'].shape[1]
    Np = p['wf2'].shape[1]
    args = [x_flat, p['wd1'], p['b1'], p['g1'], p['be1'],
            p['wd2'], p['b2'], p['g2'], p['be2'],
            p['wf1'], p['bf1'], p['wf2'], p['bf2']]
    return pl.pallas_call(
        functools.partial(_tail_kernel, n_rows=N,
                          n_chan=p['oc'], n_groups=p['groups']),
        out_shape=jax.ShapeDtypeStruct((N, Np), jnp.float32),
        cost_estimate=pl.CostEstimate(
            flops=2 * N * (2 * F * F + F * Hp + Hp * Np),
            transcendentals=4 * F,
            bytes_accessed=_nbytes(args) + N * Np * 4),
    )(*args)


# ---------------------------------------------------------------------------
# Parameters: init once, prep (transpose / fold / pad / cast) once
# ---------------------------------------------------------------------------
def make_params(key, img_shape, channel_1=64, channel_2=48, channel_3=32,
                hidden_size=100):
    in_channel, H, W = img_shape
    Hr, Wr = H // 8, W // 8                      # res-block feature-map size
    G = Hr * Wr                                  # spatial positions (=4)
    F = channel_3 * G                            # flat width (= fc_in)
    fc_in = int(channel_3 * H * W / 64)
    assert fc_in == F

    def conv_init(k, out_c, in_c, ksz):
        # PyTorch Conv2d default init (initialize_weights skips Conv2d).
        bound = 1.0 / (in_c * ksz * ksz) ** 0.5
        kw_, kb_ = jax.random.split(k)
        w = jax.random.uniform(kw_, (out_c, in_c, ksz, ksz), jnp.float32,
                               -bound, bound)
        b = jax.random.uniform(kb_, (out_c,), jnp.float32, -bound, bound)
        return w, b

    def fc_init(k, in_f, out_f):
        # xavier_uniform_ on weight (initialize_weights), default bias init.
        bound_w = (6.0 / (in_f + out_f)) ** 0.5
        bound_b = 1.0 / in_f ** 0.5
        kw_, kb_ = jax.random.split(k)
        w = jax.random.uniform(kw_, (in_f, out_f), jnp.float32, -bound_w, bound_w)
        b = jax.random.uniform(kb_, (out_f,), jnp.float32, -bound_b, bound_b)
        return w, b

    def prep_conv(w, b):
        # (O,I,kh,kw) -> (Kp, Np) with rows (dy,dx,ci); K padded to 128-mult,
        # out channels padded to 128 so the kernel output is lane-dense.
        O, I, kh, kw = w.shape
        K = kh * kw * I
        Kp, Np = _round_up(K, 128), _round_up(O, 128)
        wm = jnp.zeros((Kp, Np), jnp.float32).at[:K, :O].set(
            jnp.transpose(w, (2, 3, 1, 0)).reshape(K, O))
        bp = jnp.zeros((1, Np), jnp.float32).at[0, :O].set(b)
        return wm.astype(MXU_DTYPE), bp

    def conv_to_dense(w, pad):
        # Fold a ksz x ksz 'same' conv over the tiny Hr x Wr map into a dense
        # (G*I, G*O) matrix acting on the (h,w,c)-flattened feature vector.
        O, I, ksz, _ = w.shape
        wd = jnp.zeros((G * I, G * O), jnp.float32)
        for ho in range(Hr):
            for wo in range(Wr):
                jo = ho * Wr + wo
                for hi in range(Hr):
                    for wi in range(Wr):
                        dy, dx = hi - ho + pad, wi - wo + pad
                        if 0 <= dy < ksz and 0 <= dx < ksz:
                            ji = hi * Wr + wi
                            wd = wd.at[ji * I:(ji + 1) * I,
                                       jo * O:(jo + 1) * O].set(w[:, :, dy, dx].T)
        return wd.astype(MXU_DTYPE)

    def tile_row(v):
        return jnp.tile(v, G).reshape(1, F).astype(jnp.float32)

    keys = jax.random.split(key, 7)
    p = {}
    for i, (name, oc, ic, ksz, pad) in enumerate([
            ('conv1', channel_1, in_channel, 5, 2),
            ('conv2', channel_2, channel_1, 3, 1),
            ('conv3', channel_3, channel_2, 3, 1)]):
        w, b = conv_init(keys[i], oc, ic, ksz)
        wm, bp = prep_conv(w, b)
        p[name] = dict(w=wm, b=bp, oc=oc, k=ksz, pad=pad)

    wr1, br1 = conv_init(keys[3], channel_3, channel_3, 5)
    wr2, br2 = conv_init(keys[4], channel_3, channel_3, 5)
    wf1, bf1 = fc_init(keys[5], fc_in, hidden_size)
    wf2, bf2 = fc_init(keys[6], hidden_size, 1)

    # Fold the PyTorch NCHW flatten into fc1: our flat layout is (h,w,c),
    # PyTorch's is (c,h,w) -> permute fc1 weight rows once at prep time.
    perm = jnp.array([c * G + h * Wr + w_
                      for h in range(Hr) for w_ in range(Wr)
                      for c in range(channel_3)], dtype=jnp.int32)
    Hp = _round_up(hidden_size, 128)
    p['tail'] = dict(
        oc=channel_3, groups=G,
        wd1=conv_to_dense(wr1, 2), b1=tile_row(br1),
        g1=jnp.ones((1, F), jnp.float32), be1=jnp.zeros((1, F), jnp.float32),
        wd2=conv_to_dense(wr2, 2), b2=tile_row(br2),
        g2=jnp.ones((1, F), jnp.float32), be2=jnp.zeros((1, F), jnp.float32),
        wf1=jnp.zeros((F, Hp), jnp.float32)
            .at[:, :hidden_size].set(wf1[perm, :]).astype(MXU_DTYPE),
        bf1=jnp.zeros((1, Hp), jnp.float32).at[0, :hidden_size].set(bf1),
        wf2=jnp.zeros((Hp, 128), jnp.float32)
            .at[:hidden_size, :1].set(wf2).astype(MXU_DTYPE),
        bf2=jnp.zeros((1, 128), jnp.float32).at[0, :1].set(bf2))
    return p


# ---------------------------------------------------------------------------
# Forward pass
# ---------------------------------------------------------------------------
def wgan_discriminator_forward(x_nchw, params):
    # PyTorch NCHW input; convert once to NHWC (channels on the lane axis).
    x = jnp.transpose(x_nchw, (0, 2, 3, 1)).astype(jnp.float32)
    N = x.shape[0]

    for name in ('conv1', 'conv2', 'conv3'):
        p = params[name]
        H, W = x.shape[1], x.shape[2]
        y = conv_leaky_pool(x, p)                       # (N*H/2*W/2, 128)
        x = y[:, :p['oc']].reshape(N, H // 2, W // 2, p['oc'])

    # x: (N, Hr, Wr, C).  Flatten to (N, G*C) in (h,w,c) order; the NCHW
    # permutation the fc expects is folded into the fc1 weight at prep time.
    x_flat = x.reshape(N, -1)                           # (N, 128)

    out = tail_res_fc(x_flat, params['tail'])           # (N, 128)
    return out[:, :1]                                   # scores


if __name__ == "__main__":
    key = jax.random.PRNGKey(0)
    k_x, k_p = jax.random.split(key)

    # batch=2, img_shape=(4,16,16); three 2x2 pools -> 2x2 maps; fc_in = 128.
    img_shape = (4, 16, 16)
    x = jax.random.normal(k_x, (2,) + img_shape, dtype=jnp.float32)
    params = make_params(k_p, img_shape)

    fwd = jax.jit(lambda inp: wgan_discriminator_forward(inp, params))
    scores = jax.block_until_ready(fwd(x))
    assert scores.shape == (2, 1), scores.shape
    assert bool(jnp.all(jnp.isfinite(scores))), "non-finite output"
    print("KERNEL_OK")
</pallas_src>

<mosaic_0001>
module attributes {stable_mosaic.version = 11 : i64} {
  func.func @_conv_pool_kernel(%arg0: memref<512x128xbf16, #tpu.memory_space<vmem>>, %arg1: memref<128x128xbf16, #tpu.memory_space<vmem>>, %arg2: memref<1x128xf32, #tpu.memory_space<vmem>>, %arg3: memref<128x128xf32, #tpu.memory_space<vmem>>) attributes {dimension_semantics = [], scalar_prefetch = 0 : i64, scratch_operands = 0 : i64, tpu.core_type = #tpu.core_type<tc>} {
    %c0 = arith.constant 0 : index
    %c0_0 = arith.constant 0 : index
    %0 = vector.load %arg0[%c0, %c0_0] : memref<512x128xbf16, #tpu.memory_space<vmem>>, vector<512x128xbf16>
    %c0_1 = arith.constant 0 : index
    %c0_2 = arith.constant 0 : index
    %1 = vector.load %arg1[%c0_1, %c0_2] : memref<128x128xbf16, #tpu.memory_space<vmem>>, vector<128x128xbf16>
    %cst = arith.constant dense<0.000000e+00> : vector<512x128xf32>
    %2 = tpu.matmul %0, %1, %cst {dimension_numbers = #tpu.dot_dimension_numbers<[1], [0], [0], [1], [0, 0, 1, 1], [], []>} : vector<512x128xbf16>, vector<128x128xbf16>, vector<512x128xf32> -> vector<512x128xf32>
    %3 = vector.extract_strided_slice %2 {offsets = [0, 0], sizes = [128, 128], strides = [1, 1]} : vector<512x128xf32> to vector<128x128xf32>
    %4 = vector.extract_strided_slice %2 {offsets = [128, 0], sizes = [128, 128], strides = [1, 1]} : vector<512x128xf32> to vector<128x128xf32>
    %5 = arith.maximumf %3, %4 : vector<128x128xf32>
    %6 = vector.extract_strided_slice %2 {offsets = [256, 0], sizes = [128, 128], strides = [1, 1]} : vector<512x128xf32> to vector<128x128xf32>
    %7 = vector.extract_strided_slice %2 {offsets = [384, 0], sizes = [128, 128], strides = [1, 1]} : vector<512x128xf32> to vector<128x128xf32>
    %8 = arith.maximumf %6, %7 : vector<128x128xf32>
    %9 = arith.maximumf %5, %8 : vector<128x128xf32>
    %c0_3 = arith.constant 0 : index
    %c0_4 = arith.constant 0 : index
    %10 = vector.load %arg2[%c0_3, %c0_4] : memref<1x128xf32, #tpu.memory_space<vmem>>, vector<1x128xf32>
    %11 = vector.broadcast %10 : vector<1x128xf32> to vector<128x128xf32>
    %12 = arith.addf %9, %11 : vector<128x128xf32>
    %cst_5 = arith.constant 0.000000e+00 : f32
    %13 = vector.broadcast %cst_5 : f32 to vector<128x128xf32>
    %14 = arith.cmpf ogt, %12, %13 : vector<128x128xf32>
    %cst_6 = arith.constant 0.00999999977 : f32
    %15 = vector.broadcast %cst_6 : f32 to vector<128x128xf32>
    %16 = arith.mulf %15, %12 : vector<128x128xf32>
    %17 = arith.select %14, %12, %16 : vector<128x128xi1>, vector<128x128xf32>
    %c0_7 = arith.constant 0 : index
    %c0_8 = arith.constant 0 : index
    %18 = vector.load %arg3[%c0_7, %c0_8] : memref<128x128xf32, #tpu.memory_space<vmem>>, vector<128x128xf32>
    tpu.vector_store %arg3[%c0_7, %c0_8], %17 {strides = array<i32>} : memref<128x128xf32, #tpu.memory_space<vmem>>, vector<128x128xf32>,
    return
  }
}

module attributes {stable_mosaic.version = 11 : i64} {
  func.func @_conv_pool_kernel(%arg0: memref<128x640xbf16, #tpu.memory_space<vmem>>, %arg1: memref<640x128xbf16, #tpu.memory_space<vmem>>, %arg2: memref<1x128xf32, #tpu.memory_space<vmem>>, %arg3: memref<32x128xf32, #tpu.memory_space<vmem>>) attributes {dimension_semantics = [], scalar_prefetch = 0 : i64, scratch_operands = 0 : i64, tpu.core_type = #tpu.core_type<tc>} {
    %c0 = arith.constant 0 : index
    %c0_0 = arith.constant 0 : index
    %0 = vector.load %arg0[%c0, %c0_0] : memref<128x640xbf16, #tpu.memory_space<vmem>>, vector<128x640xbf16>
    %c0_1 = arith.constant 0 : index
    %c0_2 = arith.constant 0 : index
    %1 = vector.load %arg1[%c0_1, %c0_2] : memref<640x128xbf16, #tpu.memory_space<vmem>>, vector<640x128xbf16>
    %cst = arith.constant dense<0.000000e+00> : vector<128x128xf32>
    %2 = tpu.matmul %0, %1, %cst {dimension_numbers = #tpu.dot_dimension_numbers<[1], [0], [0], [1], [0, 0, 1, 1], [], []>} : vector<128x640xbf16>, vector<640x128xbf16>, vector<128x128xf32> -> vector<128x128xf32>
    %3 = vector.extract_strided_slice %2 {offsets = [0, 0], sizes = [32, 128], strides = [1, 1]} : vector<128x128xf32> to vector<32x128xf32>
    %4 = vector.extract_strided_slice %2 {offsets = [32, 0], sizes = [32, 128], strides = [1, 1]} : vector<128x128xf32> to vector<32x128xf32>
    %5 = arith.maximumf %3, %4 : vector<32x128xf32>
    %6 = vector.extract_strided_slice %2 {offsets = [64, 0], sizes = [32, 128], strides = [1, 1]} : vector<128x128xf32> to vector<32x128xf32>
    %7 = vector.extract_strided_slice %2 {offsets = [96, 0], sizes = [32, 128], strides = [1, 1]} : vector<128x128xf32> to vector<32x128xf32>
    %8 = arith.maximumf %6, %7 : vector<32x128xf32>
    %9 = arith.maximumf %5, %8 : vector<32x128xf32>
    %c0_3 = arith.constant 0 : index
    %c0_4 = arith.constant 0 : index
    %10 = vector.load %arg2[%c0_3, %c0_4] : memref<1x128xf32, #tpu.memory_space<vmem>>, vector<1x128xf32>
    %11 = vector.broadcast %10 : vector<1x128xf32> to vector<32x128xf32>
    %12 = arith.addf %9, %11 : vector<32x128xf32>
    %cst_5 = arith.constant 0.000000e+00 : f32
    %13 = vector.broadcast %cst_5 : f32 to vector<32x128xf32>
    %14 = arith.cmpf ogt, %12, %13 : vector<32x128xf32>
    %cst_6 = arith.constant 0.00999999977 : f32
    %15 = vector.broadcast %cst_6 : f32 to vector<32x128xf32>
    %16 = arith.mulf %15, %12 : vector<32x128xf32>
    %17 = arith.select %14, %12, %16 : vector<32x128xi1>, vector<32x128xf32>
    %c0_7 = arith.constant 0 : index
    %c0_8 = arith.constant 0 : index
    %18 = vector.load %arg3[%c0_7, %c0_8] : memref<32x128xf32, #tpu.memory_space<vmem>>, vector<32x128xf32>
    tpu.vector_store %arg3[%c0_7, %c0_8], %17 {strides = array<i32>} : memref<32x128xf32, #tpu.memory_space<vmem>>, vector<32x128xf32>,
    return
  }
}

module attributes {stable_mosaic.version = 11 : i64} {
  func.func @_conv_pool_kernel(%arg0: memref<32x512xbf16, #tpu.memory_space<vmem>>, %arg1: memref<512x128xbf16, #tpu.memory_space<vmem>>, %arg2: memref<1x128xf32, #tpu.memory_space<vmem>>, %arg3: memref<8x128xf32, #tpu.memory_space<vmem>>) attributes {dimension_semantics = [], scalar_prefetch = 0 : i64, scratch_operands = 0 : i64, tpu.core_type = #tpu.core_type<tc>} {
    %c0 = arith.constant 0 : index
    %c0_0 = arith.constant 0 : index
    %0 = vector.load %arg0[%c0, %c0_0] : memref<32x512xbf16, #tpu.memory_space<vmem>>, vector<32x512xbf16>
    %c0_1 = arith.constant 0 : index
    %c0_2 = arith.constant 0 : index
    %1 = vector.load %arg1[%c0_1, %c0_2] : memref<512x128xbf16, #tpu.memory_space<vmem>>, vector<512x128xbf16>
    %cst = arith.constant dense<0.000000e+00> : vector<32x128xf32>
    %2 = tpu.matmul %0, %1, %cst {dimension_numbers = #tpu.dot_dimension_numbers<[1], [0], [0], [1], [0, 0, 1, 1], [], []>} : vector<32x512xbf16>, vector<512x128xbf16>, vector<32x128xf32> -> vector<32x128xf32>
    %3 = vector.extract_strided_slice %2 {offsets = [0, 0], sizes = [8, 128], strides = [1, 1]} : vector<32x128xf32> to vector<8x128xf32>
    %4 = vector.extract_strided_slice %2 {offsets = [8, 0], sizes = [8, 128], strides = [1, 1]} : vector<32x128xf32> to vector<8x128xf32>
    %5 = arith.maximumf %3, %4 : vector<8x128xf32>
    %6 = vector.extract_strided_slice %2 {offsets = [16, 0], sizes = [8, 128], strides = [1, 1]} : vector<32x128xf32> to vector<8x128xf32>
    %7 = vector.extract_strided_slice %2 {offsets = [24, 0], sizes = [8, 128], strides = [1, 1]} : vector<32x128xf32> to vector<8x128xf32>
    %8 = arith.maximumf %6, %7 : vector<8x128xf32>
    %9 = arith.maximumf %5, %8 : vector<8x128xf32>
    %c0_3 = arith.constant 0 : index
    %c0_4 = arith.constant 0 : index
    %10 = vector.load %arg2[%c0_3, %c0_4] : memref<1x128xf32, #tpu.memory_space<vmem>>, vector<1x128xf32>
    %11 = vector.broadcast %10 : vector<1x128xf32> to vector<8x128xf32>
    %12 = arith.addf %9, %11 : vector<8x128xf32>
    %cst_5 = arith.constant 0.000000e+00 : f32
    %13 = vector.broadcast %cst_5 : f32 to vector<8x128xf32>
    %14 = arith.cmpf ogt, %12, %13 : vector<8x128xf32>
    %cst_6 = arith.constant 0.00999999977 : f32
    %15 = vector.broadcast %cst_6 : f32 to vector<8x128xf32>
    %16 = arith.mulf %15, %12 : vector<8x128xf32>
    %17 = arith.select %14, %12, %16 : vector<8x128xi1>, vector<8x128xf32>
    %c0_7 = arith.constant 0 : index
    %c0_8 = arith.constant 0 : index
    %18 = vector.load %arg3[%c0_7, %c0_8] : memref<8x128xf32, #tpu.memory_space<vmem>>, vector<8x128xf32>
    tpu.vector_store %arg3[%c0_7, %c0_8], %17 {strides = array<i32>} : memref<8x128xf32, #tpu.memory_space<vmem>>, vector<8x128xf32>,
    return
  }
}

module attributes {stable_mosaic.version = 11 : i64} {
  func.func @_tail_kernel(%arg0: memref<2x128xf32, #tpu.memory_space<vmem>>, %arg1: memref<128x128xbf16, #tpu.memory_space<vmem>>, %arg2: memref<1x128xf32, #tpu.memory_space<vmem>>, %arg3: memref<1x128xf32, #tpu.memory_space<vmem>>, %arg4: memref<1x128xf32, #tpu.memory_space<vmem>>, %arg5: memref<128x128xbf16, #tpu.memory_space<vmem>>, %arg6: memref<1x128xf32, #tpu.memory_space<vmem>>, %arg7: memref<1x128xf32, #tpu.memory_space<vmem>>, %arg8: memref<1x128xf32, #tpu.memory_space<vmem>>, %arg9: memref<128x128xbf16, #tpu.memory_space<vmem>>, %arg10: memref<1x128xf32, #tpu.memory_space<vmem>>, %arg11: memref<128x128xbf16, #tpu.memory_space<vmem>>, %arg12: memref<1x128xf32, #tpu.memory_space<vmem>>, %arg13: memref<2x128xf32, #tpu.memory_space<vmem>>) attributes {dimension_semantics = [], scalar_prefetch = 0 : i64, scratch_operands = 0 : i64, tpu.core_type = #tpu.core_type<tc>} {
    %c0 = arith.constant 0 : index
    %c0_0 = arith.constant 0 : index
    %0 = vector.load %arg0[%c0, %c0_0] : memref<2x128xf32, #tpu.memory_space<vmem>>, vector<2x128xf32>
    %1 = arith.truncf %0 : vector<2x128xf32> to vector<2x128xbf16>
    %c0_1 = arith.constant 0 : index
    %c0_2 = arith.constant 0 : index
    %2 = vector.load %arg1[%c0_1, %c0_2] : memref<128x128xbf16, #tpu.memory_space<vmem>>, vector<128x128xbf16>
    %cst = arith.constant dense<0.000000e+00> : vector<2x128xf32>
    %3 = tpu.matmul %1, %2, %cst {dimension_numbers = #tpu.dot_dimension_numbers<[1], [0], [0], [1], [0, 0, 1, 1], [], []>} : vector<2x128xbf16>, vector<128x128xbf16>, vector<2x128xf32> -> vector<2x128xf32>
    %c0_3 = arith.constant 0 : index
    %c0_4 = arith.constant 0 : index
    %4 = vector.load %arg2[%c0_3, %c0_4] : memref<1x128xf32, #tpu.memory_space<vmem>>, vector<1x128xf32>
    %5 = vector.broadcast %4 : vector<1x128xf32> to vector<2x128xf32>
    %6 = arith.addf %3, %5 : vector<2x128xf32>
    %c0_5 = arith.constant 0 : index
    %c0_6 = arith.constant 0 : index
    %7 = vector.load %arg3[%c0_5, %c0_6] : memref<1x128xf32, #tpu.memory_space<vmem>>, vector<1x128xf32>
    %c0_7 = arith.constant 0 : index
    %c0_8 = arith.constant 0 : index
    %8 = vector.load %arg4[%c0_7, %c0_8] : memref<1x128xf32, #tpu.memory_space<vmem>>, vector<1x128xf32>
    %c32_i32 = arith.constant 32 : i32
    %9 = tpu.dynamic_rotate %6 by %c32_i32 dim 1 : vector<2x128xf32>, i32 -> vector<2x128xf32>
    %10 = arith.addf %6, %9 : vector<2x128xf32>
    %c64_i32 = arith.constant 64 : i32
    %11 = tpu.dynamic_rotate %6 by %c64_i32 dim 1 : vector<2x128xf32>, i32 -> vector<2x128xf32>
    %12 = arith.addf %10, %11 : vector<2x128xf32>
    %c96_i32 = arith.constant 96 : i32
    %13 = tpu.dynamic_rotate %6 by %c96_i32 dim 1 : vector<2x128xf32>, i32 -> vector<2x128xf32>
    %14 = arith.addf %12, %13 : vector<2x128xf32>
    %cst_9 = arith.constant dense<0.000000e+00> : vector<128xf32>
    %15 = vector.multi_reduction <add>, %14, %cst_9 [0] : vector<2x128xf32> to vector<128xf32>
    %16 = vector.shape_cast %15 : vector<128xf32> to vector<1x128xf32>
    %cst_10 = arith.constant 1.250000e-01 : f32
    %17 = vector.broadcast %cst_10 : f32 to vector<1x128xf32>
    %18 = arith.mulf %16, %17 : vector<1x128xf32>
    %19 = vector.broadcast %18 : vector<1x128xf32> to vector<2x128xf32>
    %20 = arith.subf %6, %19 : vector<2x128xf32>
    %21 = arith.mulf %20, %20 : vector<2x128xf32>
    %c32_i32_11 = arith.constant 32 : i32
    %22 = tpu.dynamic_rotate %21 by %c32_i32_11 dim 1 : vector<2x128xf32>, i32 -> vector<2x128xf32>
    %23 = arith.addf %21, %22 : vector<2x128xf32>
    %c64_i32_12 = arith.constant 64 : i32
    %24 = tpu.dynamic_rotate %21 by %c64_i32_12 dim 1 : vector<2x128xf32>, i32 -> vector<2x128xf32>
    %25 = arith.addf %23, %24 : vector<2x128xf32>
    %c96_i32_13 = arith.constant 96 : i32
    %26 = tpu.dynamic_rotate %21 by %c96_i32_13 dim 1 : vector<2x128xf32>, i32 -> vector<2x128xf32>
    %27 = arith.addf %25, %26 : vector<2x128xf32>
    %cst_14 = arith.constant dense<0.000000e+00> : vector<128xf32>
    %28 = vector.multi_reduction <add>, %27, %cst_14 [0] : vector<2x128xf32> to vector<128xf32>
    %29 = vector.shape_cast %28 : vector<128xf32> to vector<1x128xf32>
    %cst_15 = arith.constant 1.250000e-01 : f32
    %30 = vector.broadcast %cst_15 : f32 to vector<1x128xf32>
    %31 = arith.mulf %29, %30 : vector<1x128xf32>
    %cst_16 = arith.constant 8.000000e-01 : f32
    %32 = vector.broadcast %cst_16 : f32 to vector<1x128xf32>
    %33 = arith.addf %31, %32 : vector<1x128xf32>
    %34 = math.rsqrt %33 : vector<1x128xf32>
    %35 = vector.broadcast %34 : vector<1x128xf32> to vector<2x128xf32>
    %36 = arith.mulf %20, %35 : vector<2x128xf32>
    %37 = vector.broadcast %7 : vector<1x128xf32> to vector<2x128xf32>
    %38 = arith.mulf %36, %37 : vector<2x128xf32>
    %39 = vector.broadcast %8 : vector<1x128xf32> to vector<2x128xf32>
    %40 = arith.addf %38, %39 : vector<2x128xf32>
    %cst_17 = arith.constant 0.000000e+00 : f32
    %41 = vector.broadcast %cst_17 : f32 to vector<2x128xf32>
    %42 = arith.cmpf ogt, %40, %41 : vector<2x128xf32>
    %cst_18 = arith.constant 0.00999999977 : f32
    %43 = vector.broadcast %cst_18 : f32 to vector<2x128xf32>
    %44 = arith.mulf %43, %40 : vector<2x128xf32>
    %45 = arith.select %42, %40, %44 : vector<2x128xi1>, vector<2x128xf32>
    %46 = arith.truncf %45 : vector<2x128xf32> to vector<2x128xbf16>
    %c0_19 = arith.constant 0 : index
    %c0_20 = arith.constant 0 : index
    %47 = vector.load %arg5[%c0_19, %c0_20] : memref<128x128xbf16, #tpu.memory_space<vmem>>, vector<128x128xbf16>
    %cst_21 = arith.constant dense<0.000000e+00> : vector<2x128xf32>
    %48 = tpu.matmul %46, %47, %cst_21 {dimension_numbers = #tpu.dot_dimension_numbers<[1], [0], [0], [1], [0, 0, 1, 1], [], []>} : vector<2x128xbf16>, vector<128x128xbf16>, vector<2x128xf32> -> vector<2x128xf32>
    %c0_22 = arith.constant 0 : index
    %c0_23 = arith.constant 0 : index
    %49 = vector.load %arg6[%c0_22, %c0_23] : memref<1x128xf32, #tpu.memory_space<vmem>>, vector<1x128xf32>
    %50 = vector.broadcast %49 : vector<1x128xf32> to vector<2x128xf32>
    %51 = arith.addf %48, %50 : vector<2x128xf32>
    %c0_24 = arith.constant 0 : index
    %c0_25 = arith.constant 0 : index
    %52 = vector.load %arg7[%c0_24, %c0_25] : memref<1x128xf32, #tpu.memory_space<vmem>>, vector<1x128xf32>
    %c0_26 = arith.constant 0 : index
    %c0_27 = arith.constant 0 : index
    %53 = vector.load %arg8[%c0_26, %c0_27] : memref<1x128xf32, #tpu.memory_space<vmem>>, vector<1x128xf32>
    %c32_i32_28 = arith.constant 32 : i32
    %54 = tpu.dynamic_rotate %51 by %c32_i32_28 dim 1 : vector<2x128xf32>, i32 -> vector<2x128xf32>
    %55 = arith.addf %51, %54 : vector<2x128xf32>
    %c64_i32_29 = arith.constant 64 : i32
    %56 = tpu.dynamic_rotate %51 by %c64_i32_29 dim 1 : vector<2x128xf32>, i32 -> vector<2x128xf32>
    %57 = arith.addf %55, %56 : vector<2x128xf32>
    %c96_i32_30 = arith.constant 96 : i32
    %58 = tpu.dynamic_rotate %51 by %c96_i32_30 dim 1 : vector<2x128xf32>, i32 -> vector<2x128xf32>
    %59 = arith.addf %57, %58 : vector<2x128xf32>
    %cst_31 = arith.constant dense<0.000000e+00> : vector<128xf32>
    %60 = vector.multi_reduction <add>, %59, %cst_31 [0] : vector<2x128xf32> to vector<128xf32>
    %61 = vector.shape_cast %60 : vector<128xf32> to vector<1x128xf32>
    %cst_32 = arith.constant 1.250000e-01 : f32
    %62 = vector.broadcast %cst_32 : f32 to vector<1x128xf32>
    %63 = arith.mulf %61, %62 : vector<1x128xf32>
    %64 = vector.broadcast %63 : vector<1x128xf32> to vector<2x128xf32>
    %65 = arith.subf %51, %64 : vector<2x128xf32>
    %66 = arith.mulf %65, %65 : vector<2x128xf32>
    %c32_i32_33 = arith.constant 32 : i32
    %67 = tpu.dynamic_rotate %66 by %c32_i32_33 dim 1 : vector<2x128xf32>, i32 -> vector<2x128xf32>
    %68 = arith.addf %66, %67 : vector<2x128xf32>
    %c64_i32_34 = arith.constant 64 : i32
    %69 = tpu.dynamic_rotate %66 by %c64_i32_34 dim 1 : vector<2x128xf32>, i32 -> vector<2x128xf32>
    %70 = arith.addf %68, %69 : vector<2x128xf32>
    %c96_i32_35 = arith.constant 96 : i32
    %71 = tpu.dynamic_rotate %66 by %c96_i32_35 dim 1 : vector<2x128xf32>, i32 -> vector<2x128xf32>
    %72 = arith.addf %70, %71 : vector<2x128xf32>
    %cst_36 = arith.constant dense<0.000000e+00> : vector<128xf32>
    %73 = vector.multi_reduction <add>, %72, %cst_36 [0] : vector<2x128xf32> to vector<128xf32>
    %74 = vector.shape_cast %73 : vector<128xf32> to vector<1x128xf32>
    %cst_37 = arith.constant 1.250000e-01 : f32
    %75 = vector.broadcast %cst_37 : f32 to vector<1x128xf32>
    %76 = arith.mulf %74, %75 : vector<1x128xf32>
    %cst_38 = arith.constant 8.000000e-01 : f32
    %77 = vector.broadcast %cst_38 : f32 to vector<1x128xf32>
    %78 = arith.addf %76, %77 : vector<1x128xf32>
    %79 = math.rsqrt %78 : vector<1x128xf32>
    %80 = vector.broadcast %79 : vector<1x128xf32> to vector<2x128xf32>
    %81 = arith.mulf %65, %80 : vector<2x128xf32>
    %82 = vector.broadcast %52 : vector<1x128xf32> to vector<2x128xf32>
    %83 = arith.mulf %81, %82 : vector<2x128xf32>
    %84 = vector.broadcast %53 : vector<1x128xf32> to vector<2x128xf32>
    %85 = arith.addf %83, %84 : vector<2x128xf32>
    %86 = arith.addf %0, %85 : vector<2x128xf32>
    %cst_39 = arith.constant 0.000000e+00 : f32
    %87 = vector.broadcast %cst_39 : f32 to vector<2x128xf32>
    %88 = arith.cmpf ogt, %86, %87 : vector<2x128xf32>
    %cst_40 = arith.constant 0.00999999977 : f32
    %89 = vector.broadcast %cst_40 : f32 to vector<2x128xf32>
    %90 = arith.mulf %89, %86 : vector<2x128xf32>
    %91 = arith.select %88, %86, %90 : vector<2x128xi1>, vector<2x128xf32>
    %92 = arith.truncf %91 : vector<2x128xf32> to vector<2x128xbf16>
    %c0_41 = arith.constant 0 : index
    %c0_42 = arith.constant 0 : index
    %93 = vector.load %arg9[%c0_41, %c0_42] : memref<128x128xbf16, #tpu.memory_space<vmem>>, vector<128x128xbf16>
    %cst_43 = arith.constant dense<0.000000e+00> : vector<2x128xf32>
    %94 = tpu.matmul %92, %93, %cst_43 {dimension_numbers = #tpu.dot_dimension_numbers<[1], [0], [0], [1], [0, 0, 1, 1], [], []>} : vector<2x128xbf16>, vector<128x128xbf16>, vector<2x128xf32> -> vector<2x128xf32>
    %c0_44 = arith.constant 0 : index
    %c0_45 = arith.constant 0 : index
    %95 = vector.load %arg10[%c0_44, %c0_45] : memref<1x128xf32, #tpu.memory_space<vmem>>, vector<1x128xf32>
    %96 = vector.broadcast %95 : vector<1x128xf32> to vector<2x128xf32>
    %97 = arith.addf %94, %96 : vector<2x128xf32>
    %cst_46 = arith.constant 0.000000e+00 : f32
    %98 = vector.broadcast %cst_46 : f32 to vector<2x128xf32>
    %99 = arith.cmpf ogt, %97, %98 : vector<2x128xf32>
    %cst_47 = arith.constant 0.00999999977 : f32
    %100 = vector.broadcast %cst_47 : f32 to vector<2x128xf32>
    %101 = arith.mulf %100, %97 : vector<2x128xf32>
    %102 = arith.select %99, %97, %101 : vector<2x128xi1>, vector<2x128xf32>
    %103 = arith.truncf %102 : vector<2x128xf32> to vector<2x128xbf16>
    %c0_48 = arith.constant 0 : index
    %c0_49 = arith.constant 0 : index
    %104 = vector.load %arg11[%c0_48, %c0_49] : memref<128x128xbf16, #tpu.memory_space<vmem>>, vector<128x128xbf16>
    %cst_50 = arith.constant dense<0.000000e+00> : vector<2x128xf32>
    %105 = tpu.matmul %103, %104, %cst_50 {dimension_numbers = #tpu.dot_dimension_numbers<[1], [0], [0], [1], [0, 0, 1, 1], [], []>} : vector<2x128xbf16>, vector<128x128xbf16>, vector<2x128xf32> -> vector<2x128xf32>
    %c0_51 = arith.constant 0 : index
    %c0_52 = arith.constant 0 : index
    %106 = vector.load %arg12[%c0_51, %c0_52] : memref<1x128xf32, #tpu.memory_space<vmem>>, vector<1x128xf32>
    %107 = vector.broadcast %106 : vector<1x128xf32> to vector<2x128xf32>
    %108 = arith.addf %105, %107 : vector<2x128xf32>
    %c0_53 = arith.constant 0 : index
    %c0_54 = arith.constant 0 : index
    %109 = vector.load %arg13[%c0_53, %c0_54] : memref<2x128xf32, #tpu.memory_space<vmem>>, vector<2x128xf32>
    tpu.vector_store %arg13[%c0_53, %c0_54], %108 {strides = array<i32>} : memref<2x128xf32, #tpu.memory_space<vmem>>, vector<2x128xf32>,
    return
  }
}

</mosaic_0001>

<llo_original>
// kernel: _lambda_.4
$region0: #{_lambda_.4}
  #allocation0 [shape = 'u32[]', space=smem, size = 0x4, offset = 0x4, fixed_abs, tag = 'smem constant byte address 0x4 - core index']
  #allocation1 [shape = 'u32[144,128]{1,0:T(1,128)}', space=vmem, size = 0x12000, scoped, tag = 'internal scratch']
  %s0 = inlined_call_operand.vmem [shape: bf16[512,128], index: 0, kind: input, shape index: {}]
  %s1 = inlined_call_operand.vmem [shape: bf16[128,128], index: 1, kind: input, shape index: {}]
  %s2 = inlined_call_operand.vmem [shape: f32[1,128], index: 2, kind: input, shape index: {}]
  %s3 = inlined_call_operand.vmem [shape: f32[128,128], index: 3, kind: output, shape index: {}]
  %s4 = sld [smem:[#allocation0]]
  $region22: #{_lambda_.4} parent=0
    _
  %s6 = ssub.s32 1, %s4
  %s7 = scalar_select 0, %s6, %s4
  // Predicated region
  $region2: #{_lambda_.4} parent=0 // pred_check
    _
  $region3: #{_lambda_.4} parent=0 // pred_check_branch
    %9 = sbr.rel (0) target = $region5
  $region4: #{_lambda_.4} parent=0 // pred_region
    _
  $region5: #{_lambda_.4} parent=0 // pred_fallthru
    _
  // Predicated region
  $region6: #{_lambda_.4} parent=0 // pred_check
    _
  $region7: #{_lambda_.4} parent=0 // pred_check_branch
    %11 = sbr.rel (0) target = $region9
  $region8: #{_lambda_.4} parent=0 // pred_region
    _
  $region9: #{_lambda_.4} parent=0 // pred_fallthru
    _
  // Predicated region
  $region10: #{_lambda_.4} parent=0 // pred_check
    _
  $region11: #{_lambda_.4} parent=0 // pred_check_branch
    %13 = sbr.rel (0) target = $region13
  $region12: #{_lambda_.4} parent=0 // pred_region
    _
  $region13: #{_lambda_.4} parent=0 // pred_fallthru
    _
  %v15 = vld [vmem:[%s0] sm:$0xf]
  %v16 = vld [vmem:[%s0 + $0x4] sm:$0xf]
  %v17 = vld [vmem:[%s0 + $0x8] sm:$0xf]
  %v18 = vld [vmem:[%s0 + $0xc] sm:$0xf]
  %v19 = vld [vmem:[%s0 + $0x10] sm:$0xf]
  %v20 = vld [vmem:[%s0 + $0x14] sm:$0xf]
  %v21 = vld [vmem:[%s0 + $0x18] sm:$0xf]
  %v22 = vld [vmem:[%s0 + $0x1c] sm:$0xf]
  %v23 = vld [vmem:[%s0 + $0x20] sm:$0xf]
  %v24 = vld [vmem:[%s0 + $0x24] sm:$0xf]
  %v25 = vld [vmem:[%s0 + $0x28] sm:$0xf]
  %v26 = vld [vmem:[%s0 + $0x2c] sm:$0xf]
  %v27 = vld [vmem:[%s0 + $0x30] sm:$0xf]
  %v28 = vld [vmem:[%s0 + $0x34] sm:$0xf]
  %v29 = vld [vmem:[%s0 + $0x38] sm:$0xf]
  %v30 = vld [vmem:[%s0 + $0x3c] sm:$0xf]
  %v31 = vld [vmem:[%s0 + $0x40] sm:$0xf]
  %v32 = vld [vmem:[%s0 + $0x44] sm:$0xf]
  %v33 = vld [vmem:[%s0 + $0x48] sm:$0xf]
  %v34 = vld [vmem:[%s0 + $0x4c] sm:$0xf]
  %v35 = vld [vmem:[%s0 + $0x50] sm:$0xf]
  %v36 = vld [vmem:[%s0 + $0x54] sm:$0xf]
  %v37 = vld [vmem:[%s0 + $0x58] sm:$0xf]
  %v38 = vld [vmem:[%s0 + $0x5c] sm:$0xf]
  %v39 = vld [vmem:[%s0 + $0x60] sm:$0xf]
  %v40 = vld [vmem:[%s0 + $0x64] sm:$0xf]
  %v41 = vld [vmem:[%s0 + $0x68] sm:$0xf]
  %v42 = vld [vmem:[%s0 + $0x6c] sm:$0xf]
  %v43 = vld [vmem:[%s0 + $0x70] sm:$0xf]
  %v44 = vld [vmem:[%s0 + $0x74] sm:$0xf]
  %v45 = vld [vmem:[%s0 + $0x78] sm:$0xf]
  %v46 = vld [vmem:[%s0 + $0x7c] sm:$0xf]
  %v47 = vld [vmem:[%s0 + $0x80] sm:$0xf]
  %v48 = vld [vmem:[%s0 + $0x84] sm:$0xf]
  %v49 = vld [vmem:[%s0 + $0x88] sm:$0xf]
  %v50 = vld [vmem:[%s0 + $0x8c] sm:$0xf]
  %v51 = vld [vmem:[%s0 + $0x90] sm:$0xf]
  %v52 = vld [vmem:[%s0 + $0x94] sm:$0xf]
  %v53 = vld [vmem:[%s0 + $0x98] sm:$0xf]
  %v54 = vld [vmem:[%s0 + $0x9c] sm:$0xf]
  %v55 = vld [vmem:[%s0 + $0xa0] sm:$0xf]
  %v56 = vld [vmem:[%s0 + $0xa4] sm:$0xf]
  %v57 = vld [vmem:[%s0 + $0xa8] sm:$0xf]
  %v58 = vld [vmem:[%s0 + $0xac] sm:$0xf]
  %v59 = vld [vmem:[%s0 + $0xb0] sm:$0xf]
  %v60 = vld [vmem:[%s0 + $0xb4] sm:$0xf]
  %v61 = vld [vmem:[%s0 + $0xb8] sm:$0xf]
  %v62 = vld [vmem:[%s0 + $0xbc] sm:$0xf]
  %v63 = vld [vmem:[%s0 + $0xc0] sm:$0xf]
  %v64 = vld [vmem:[%s0 + $0xc4] sm:$0xf]
  %v65 = vld [vmem:[%s0 + $0xc8] sm:$0xf]
  %v66 = vld [vmem:[%s0 + $0xcc] sm:$0xf]
  %v67 = vld [vmem:[%s0 + $0xd0] sm:$0xf]
  %v68 = vld [vmem:[%s0 + $0xd4] sm:$0xf]
  %v69 = vld [vmem:[%s0 + $0xd8] sm:$0xf]
  %v70 = vld [vmem:[%s0 + $0xdc] sm:$0xf]
  %v71 = vld [vmem:[%s0 + $0xe0] sm:$0xf]
  %v72 = vld [vmem:[%s0 + $0xe4] sm:$0xf]
  %v73 = vld [vmem:[%s0 + $0xe8] sm:$0xf]
  %v74 = vld [vmem:[%s0 + $0xec] sm:$0xf]
  %v75 = vld [vmem:[%s0 + $0xf0] sm:$0xf]
  %v76 = vld [vmem:[%s0 + $0xf4] sm:$0xf]
  %v77 = vld [vmem:[%s0 + $0xf8] sm:$0xf]
  %v78 = vld [vmem:[%s0 + $0xfc] sm:$0xf]
  %v79 = vld [vmem:[%s1] sm:$0xf]
  %v80 = vld [vmem:[%s1 + $0x4] sm:$0xf]
  %v81 = vld [vmem:[%s1 + $0x8] sm:$0xf]
  %v82 = vld [vmem:[%s1 + $0xc] sm:$0xf]
  %v83 = vld [vmem:[%s1 + $0x10] sm:$0xf]
  %v84 = vld [vmem:[%s1 + $0x14] sm:$0xf]
  %v85 = vld [vmem:[%s1 + $0x18] sm:$0xf]
  %v86 = vld [vmem:[%s1 + $0x1c] sm:$0xf]
  %v87 = vld [vmem:[%s1 + $0x20] sm:$0xf]
  %v88 = vld [vmem:[%s1 + $0x24] sm:$0xf]
  %v89 = vld [vmem:[%s1 + $0x28] sm:$0xf]
  %v90 = vld [vmem:[%s1 + $0x2c] sm:$0xf]
  %v91 = vld [vmem:[%s1 + $0x30] sm:$0xf]
  %v92 = vld [vmem:[%s1 + $0x34] sm:$0xf]
  %v93 = vld [vmem:[%s1 + $0x38] sm:$0xf]
  %v94 = vld [vmem:[%s1 + $0x3c] sm:$0xf]
  %v159 = vunpack.c.l.b16 %v15
  %v160 = vunpack.c.l.b16 %v16
  %v161 = vunpack.c.l.b16 %v17
  %v162 = vunpack.c.l.b16 %v18
  %v163 = vunpack.c.l.b16 %v19
  %v164 = vunpack.c.l.b16 %v20
  %v165 = vunpack.c.l.b16 %v21
  %v166 = vunpack.c.l.b16 %v22
  %v167 = vunpack.c.l.b16 %v23
  %v168 = vunpack.c.l.b16 %v24
  %v169 = vunpack.c.l.b16 %v25
  %v170 = vunpack.c.l.b16 %v26
  %v171 = vunpack.c.l.b16 %v27
  %v172 = vunpack.c.l.b16 %v28
  %v173 = vunpack.c.l.b16 %v29
  %v174 = vunpack.c.l.b16 %v30
  %v175 = vunpack.c.l.b16 %v31
  %v176 = vunpack.c.l.b16 %v32
  %v177 = vunpack.c.l.b16 %v33
  %v178 = vunpack.c.l.b16 %v34
  %v179 = vunpack.c.l.b16 %v35
  %v180 = vunpack.c.l.b16 %v36
  %v181 = vunpack.c.l.b16 %v37
  %v182 = vunpack.c.l.b16 %v38
  %v183 = vunpack.c.l.b16 %v39
  %v184 = vunpack.c.l.b16 %v40
  %v185 = vunpack.c.l.b16 %v41
  %v186 = vunpack.c.l.b16 %v42
  %v187 = vunpack.c.l.b16 %v43
  %v188 = vunpack.c.l.b16 %v44
  %v189 = vunpack.c.l.b16 %v45
  %v190 = vunpack.c.l.b16 %v46
  %v191 = vunpack.c.l.b16 %v47
  %v192 = vunpack.c.l.b16 %v48
  %v193 = vunpack.c.l.b16 %v49
  %v194 = vunpack.c.l.b16 %v50
  %v195 = vunpack.c.l.b16 %v51
  %v196 = vunpack.c.l.b16 %v52
  %v197 = vunpack.c.l.b16 %v53
  %v198 = vunpack.c.l.b16 %v54
  %v199 = vunpack.c.l.b16 %v55
  %v200 = vunpack.c.l.b16 %v56
  %v201 = vunpack.c.l.b16 %v57
  %v202 = vunpack.c.l.b16 %v58
  %v203 = vunpack.c.l.b16 %v59
  %v204 = vunpack.c.l.b16 %v60
  %v205 = vunpack.c.l.b16 %v61
  %v206 = vunpack.c.l.b16 %v62
  %v207 = vunpack.c.l.b16 %v63
  %v208 = vunpack.c.l.b16 %v64
  %v209 = vunpack.c.l.b16 %v65
  %v210 = vunpack.c.l.b16 %v66
  %v211 = vunpack.c.l.b16 %v67
  %v212 = vunpack.c.l.b16 %v68
  %v213 = vunpack.c.l.b16 %v69
  %v214 = vunpack.c.l.b16 %v70
  %v215 = vunpack.c.l.b16 %v71
  %v216 = vunpack.c.l.b16 %v72
  %v217 = vunpack.c.l.b16 %v73
  %v218 = vunpack.c.l.b16 %v74
  %v219 = vunpack.c.l.b16 %v75
  %v220 = vunpack.c.l.b16 %v76
  %v221 = vunpack.c.l.b16 %v77
  %v222 = vunpack.c.l.b16 %v78
  %v223 = vpack.c.b16 %v160, %v159
  %v224 = vpack.c.b16 %v162, %v161
  %v225 = vpack.c.b16 %v164, %v163
  %v226 = vpack.c.b16 %v166, %v165
  %v227 = vpack.c.b16 %v168, %v167
  %v228 = vpack.c.b16 %v170, %v169
  %v229 = vpack.c.b16 %v172, %v171
  %v230 = vpack.c.b16 %v174, %v173
  %v231 = vpack.c.b16 %v176, %v175
  %v232 = vpack.c.b16 %v178, %v177
  %v233 = vpack.c.b16 %v180, %v179
  %v234 = vpack.c.b16 %v182, %v181
  %v235 = vpack.c.b16 %v184, %v183
  %v236 = vpack.c.b16 %v186, %v185
  %v237 = vpack.c.b16 %v188, %v187
  %v238 = vpack.c.b16 %v190, %v189
  %v239 = vpack.c.b16 %v192, %v191
  %v240 = vpack.c.b16 %v194, %v193
  %v241 = vpack.c.b16 %v196, %v195
  %v242 = vpack.c.b16 %v198, %v197
  %v243 = vpack.c.b16 %v200, %v199
  %v244 = vpack.c.b16 %v202, %v201
  %v245 = vpack.c.b16 %v204, %v203
  %v246 = vpack.c.b16 %v206, %v205
  %v247 = vpack.c.b16 %v208, %v207
  %v248 = vpack.c.b16 %v210, %v209
  %v249 = vpack.c.b16 %v212, %v211
  %v250 = vpack.c.b16 %v214, %v213
  %v251 = vpack.c.b16 %v216, %v215
  %v252 = vpack.c.b16 %v218, %v217
  %v253 = vpack.c.b16 %v220, %v219
  %v254 = vpack.c.b16 %v222, %v221
  %v303 = vunpack.c.l.b16 %v79
  %v304 = vunpack.c.l.b16 %v80
  %v305 = vunpack.c.l.b16 %v81
  %v306 = vunpack.c.l.b16 %v82
  %v307 = vunpack.c.l.b16 %v83
  %v308 = vunpack.c.l.b16 %v84
  %v309 = vunpack.c.l.b16 %v85
  %v310 = vunpack.c.l.b16 %v86
  %v311 = vunpack.c.l.b16 %v87
  %v312 = vunpack.c.l.b16 %v88
  %v313 = vunpack.c.l.b16 %v89
  %v314 = vunpack.c.l.b16 %v90
  %v315 = vunpack.c.l.b16 %v91
  %v316 = vunpack.c.l.b16 %v92
  %v317 = vunpack.c.l.b16 %v93
  %v318 = vunpack.c.l.b16 %v94
  %v319 = vpack.c.b16 %v304, %v303
  %v320 = vpack.c.b16 %v306, %v305
  %v321 = vpack.c.b16 %v308, %v307
  %v322 = vpack.c.b16 %v310, %v309
  %v323 = vpack.c.b16 %v312, %v311
  %v324 = vpack.c.b16 %v314, %v313
  %v325 = vpack.c.b16 %v316, %v315
  %v326 = vpack.c.b16 %v318, %v317
  %335 = vmatprep.subr.bf16.mxu0 0
  %336 = vmatpush1.bf16.msra.mxu0 %v319
  %337 = vmatprep.subr.bf16.mxu0 0
  %338 = vmatpush1.bf16.msra.mxu0 %v320
  %339 = vmatprep.subr.bf16.mxu0 0
  %340 = vmatpush1.bf16.msra.mxu0 %v321
  %341 = vmatprep.subr.bf16.mxu0 0
  %342 = vmatpush1.bf16.msra.mxu0 %v322
  %343 = vmatprep.subr.bf16.mxu0 0
  %344 = vmatpush1.bf16.msra.mxu0 %v323
  %345 = vmatprep.subr.bf16.mxu0 0
  %346 = vmatpush1.bf16.msra.mxu0 %v324
  %347 = vmatprep.subr.bf16.mxu0 0
  %348 = vmatpush1.bf16.msra.mxu0 %v325
  %349 = vmatprep.subr.bf16.mxu0 0
  %350 = vmatpush1.bf16.msra.mxu0 %v326
  %351 = vmatprep.subr.bf16.mxu0 0
  %352 = vmatpush1.bf16.msra.mxu0 0
  %353 = vmatprep.subr.bf16.mxu0 0
  %354 = vmatpush1.bf16.msra.mxu0 0
  %355 = vmatprep.subr.bf16.mxu0 0
  %356 = vmatpush1.bf16.msra.mxu0 0
  %357 = vmatprep.subr.bf16.mxu0 0
  %358 = vmatpush1.bf16.msra.mxu0 0
  %359 = vmatprep.subr.bf16.mxu0 0
  %360 = vmatpush1.bf16.msra.mxu0 0
  %361 = vmatprep.subr.bf16.mxu0 0
  %362 = vmatpush1.bf16.msra.mxu0 0
  %363 = vmatprep.subr.bf16.mxu0 0
  %364 = vmatpush1.bf16.msra.mxu0 0
  %365 = vmatprep.subr.bf16.mxu0 0
  %366 = vmatpush1.bf16.msra.mxu0 0
  %367 = vmatprep.mubr.bf16.mxu0 0
  %368 = vmatmul.mubr.bf16.gmra.mrb[0].mxu0 %v223
  %v369 = vpop.f32.mrb[0].mxu0
  %v370 = vadd.f32 0.0, %v369
  %v371 = vpop.f32.mrb[0].mxu0
  %v372 = vpop.f32.mrb[0].mxu0
  %v373 = vadd.f32 0.0, %v372
  %v374 = vpop.f32.mrb[0].mxu0
  %375 = vmatprep.mubr.bf16.mxu0 0
  %376 = vmatmul.mubr.bf16.gmra.mrb[0].mxu0 %v224
  %v377 = vpop.f32.mrb[0].mxu0
  %v378 = vadd.f32 0.0, %v377
  %v379 = vpop.f32.mrb[0].mxu0
  %v380 = vpop.f32.mrb[0].mxu0
  %v381 = vadd.f32 0.0, %v380
  %v382 = vpop.f32.mrb[0].mxu0
  %383 = vmatprep.mubr.bf16.mxu0 0
  %384 = vmatmul.mubr.bf16.gmra.mrb[0].mxu0 %v225
  %v385 = vpop.f32.mrb[0].mxu0
  %v386 = vadd.f32 0.0, %v385
  %v387 = vpop.f32.mrb[0].mxu0
  %v388 = vpop.f32.mrb[0].mxu0
  %v389 = vadd.f32 0.0, %v388
  %v390 = vpop.f32.mrb[0].mxu0
  %391 = vmatprep.mubr.bf16.mxu0 0
  %392 = vmatmul.mubr.bf16.gmra.mrb[0].mxu0 %v226
  %v393 = vpop.f32.mrb[0].mxu0
  %v394 = vadd.f32 0.0, %v393
  %v395 = vpop.f32.mrb[0].mxu0
  %v396 = vpop.f32.mrb[0].mxu0
  %v397 = vadd.f32 0.0, %v396
  %v398 = vpop.f32.mrb[0].mxu0
  %399 = vmatprep.mubr.bf16.mxu0 0
  %400 = vmatmul.mubr.bf16.gmra.mrb[0].mxu0 %v227
  %v401 = vpop.f32.mrb[0].mxu0
  %v402 = vadd.f32 0.0, %v401
  %v403 = vpop.f32.mrb[0].mxu0
  %v404 = vpop.f32.mrb[0].mxu0
  %v405 = vadd.f32 0.0, %v404
  %v406 = vpop.f32.mrb[0].mxu0
  %407 = vmatprep.mubr.bf16.mxu0 0
  %408 = vmatmul.mubr.bf16.gmra.mrb[0].mxu0 %v228
  %v409 = vpop.f32.mrb[0].mxu0
  %v410 = vadd.f32 0.0, %v409
  %v411 = vpop.f32.mrb[0].mxu0
  %v412 = vpop.f32.mrb[0].mxu0
  %v413 = vadd.f32 0.0, %v412
  %v414 = vpop.f32.mrb[0].mxu0
  %415 = vmatprep.mubr.bf16.mxu0 0
  %416 = vmatmul.mubr.bf16.gmra.mrb[0].mxu0 %v229
  %v417 = vpop.f32.mrb[0].mxu0
  %v418 = vadd.f32 0.0, %v417
  %v419 = vpop.f32.mrb[0].mxu0
  %v420 = vpop.f32.mrb[0].mxu0
  %v421 = vadd.f32 0.0, %v420
  %v422 = vpop.f32.mrb[0].mxu0
  %423 = vmatprep.mubr.bf16.mxu0 0
  %424 = vmatmul.mubr.bf16.gmra.mrb[0].mxu0 %v230
  %v425 = vpop.f32.mrb[0].mxu0
  %v426 = vadd.f32 0.0, %v425
  %v427 = vpop.f32.mrb[0].mxu0
  %v428 = vpop.f32.mrb[0].mxu0
  %v429 = vadd.f32 0.0, %v428
  %v430 = vpop.f32.mrb[0].mxu0
  %431 = vmatprep.mubr.bf16.mxu0 0
  %432 = vmatmul.mubr.bf16.gmra.mrb[0].mxu0 %v231
  %v433 = vpop.f32.mrb[0].mxu0
  %v434 = vadd.f32 0.0, %v433
  %v435 = vpop.f32.mrb[0].mxu0
  %v436 = vpop.f32.mrb[0].mxu0
  %v437 = vadd.f32 0.0, %v436
  %v438 = vpop.f32.mrb[0].mxu0
  %439 = vmatprep.mubr.bf16.mxu0 0
  %440 = vmatmul.mubr.bf16.gmra.mrb[0].mxu0 %v232
  %v441 = vpop.f32.mrb[0].mxu0
  %v442 = vadd.f32 0.0, %v441
  %v443 = vpop.f32.mrb[0].mxu0
  %v444 = vpop.f32.mrb[0].mxu0
  %v445 = vadd.f32 0.0, %v444
  %v446 = vpop.f32.mrb[0].mxu0
  %447 = vmatprep.mubr.bf16.mxu0 0
  %448 = vmatmul.mubr.bf16.gmra.mrb[0].mxu0 %v233
  %v449 = vpop.f32.mrb[0].mxu0
  %v450 = vadd.f32 0.0, %v449
  %v451 = vpop.f32.mrb[0].mxu0
  %v452 = vpop.f32.mrb[0].mxu0
  %v453 = vadd.f32 0.0, %v452
  %v454 = vpop.f32.mrb[0].mxu0
  %455 = vmatprep.mubr.bf16.mxu0 0
  %456 = vmatmul.mubr.bf16.gmra.mrb[0].mxu0 %v234
  %v457 = vpop.f32.mrb[0].mxu0
  %v458 = vadd.f32 0.0, %v457
  %v459 = vpop.f32.mrb[0].mxu0
  %v460 = vpop.f32.mrb[0].mxu0
  %v461 = vadd.f32 0.0, %v460
  %v462 = vpop.f32.mrb[0].mxu0
  %463 = vmatprep.mubr.bf16.mxu0 0
  %464 = vmatmul.mubr.bf16.gmra.mrb[0].mxu0 %v235
  %v465 = vpop.f32.mrb[0].mxu0
  %v466 = vadd.f32 0.0, %v465
  %v467 = vpop.f32.mrb[0].mxu0
  %v468 = vpop.f32.mrb[0].mxu0
  %v469 = vadd.f32 0.0, %v468
  %v470 = vpop.f32.mrb[0].mxu0
  %471 = vmatprep.mubr.bf16.mxu0 0
  %472 = vmatmul.mubr.bf16.gmra.mrb[0].mxu0 %v236
  %v473 = vpop.f32.mrb[0].mxu0
  %v474 = vadd.f32 0.0, %v473
  %v475 = vpop.f32.mrb[0].mxu0
  %v476 = vpop.f32.mrb[0].mxu0
  %v477 = vadd.f32 0.0, %v476
  %v478 = vpop.f32.mrb[0].mxu0
  %479 = vmatprep.mubr.bf16.mxu0 0
  %480 = vmatmul.mubr.bf16.gmra.mrb[0].mxu0 %v237
  %v481 = vpop.f32.mrb[0].mxu0
  %v482 = vadd.f32 0.0, %v481
  %v483 = vpop.f32.mrb[0].mxu0
  %v484 = vpop.f32.mrb[0].mxu0
  %v485 = vadd.f32 0.0, %v484
  %v486 = vpop.f32.mrb[0].mxu0
  %487 = vmatprep.mubr.bf16.mxu0 0
  %488 = vmatmul.mubr.bf16.gmra.mrb[0].mxu0 %v238
  %v489 = vpop.f32.mrb[0].mxu0
  %v490 = vadd.f32 0.0, %v489
  %v491 = vpop.f32.mrb[0].mxu0
  %v492 = vpop.f32.mrb[0].mxu0
  %v493 = vadd.f32 0.0, %v492
  %v494 = vpop.f32.mrb[0].mxu0
  %495 = vmatprep.mubr.bf16.mxu0 0
  %496 = vmatmul.mubr.bf16.gmra.mrb[0].mxu0 %v239
  %v497 = vpop.f32.mrb[0].mxu0
  %v498 = vadd.f32 0.0, %v497
  %v499 = vpop.f32.mrb[0].mxu0
  %v500 = vpop.f32.mrb[0].mxu0
  %v501 = vadd.f32 0.0, %v500
  %v502 = vpop.f32.mrb[0].mxu0
  %503 = vmatprep.mubr.bf16.mxu0 0
  %504 = vmatmul.mubr.bf16.gmra.mrb[0].mxu0 %v240
  %v505 = vpop.f32.mrb[0].mxu0
  %v506 = vadd.f32 0.0, %v505
  %v507 = vpop.f32.mrb[0].mxu0
  %v508 = vpop.f32.mrb[0].mxu0
  %v509 = vadd.f32 0.0, %v508
  %v510 = vpop.f32.mrb[0].mxu0
  %511 = vmatprep.mubr.bf16.mxu0 0
  %512 = vmatmul.mubr.bf16.gmra.mrb[0].mxu0 %v241
  %v513 = vpop.f32.mrb[0].mxu0
  %v514 = vadd.f32 0.0, %v513
  %v515 = vpop.f32.mrb[0].mxu0
  %v516 = vpop.f32.mrb[0].mxu0
  %v517 = vadd.f32 0.0, %v516
  %v518 = vpop.f32.mrb[0].mxu0
  %519 = vmatprep.mubr.bf16.mxu0 0
  %520 = vmatmul.mubr.bf16.gmra.mrb[0].mxu0 %v242
  %v521 = vpop.f32.mrb[0].mxu0
  %v522 = vadd.f32 0.0, %v521
  %v523 = vpop.f32.mrb[0].mxu0
  %v524 = vpop.f32.mrb[0].mxu0
  %v525 = vadd.f32 0.0, %v524
  %v526 = vpop.f32.mrb[0].mxu0
  %527 = vmatprep.mubr.bf16.mxu0 0
  %528 = vmatmul.mubr.bf16.gmra.mrb[0].mxu0 %v243
  %v529 = vpop.f32.mrb[0].mxu0
  %v530 = vadd.f32 0.0, %v529
  %v531 = vpop.f32.mrb[0].mxu0
  %v532 = vpop.f32.mrb[0].mxu0
  %v533 = vadd.f32 0.0, %v532
  %v534 = vpop.f32.mrb[0].mxu0
  %535 = vmatprep.mubr.bf16.mxu0 0
  %536 = vmatmul.mubr.bf16.gmra.mrb[0].mxu0 %v244
  %v537 = vpop.f32.mrb[0].mxu0
  %v538 = vadd.f32 0.0, %v537
  %v539 = vpop.f32.mrb[0].mxu0
  %v540 = vpop.f32.mrb[0].mxu0
  %v541 = vadd.f32 0.0, %v540
  %v542 = vpop.f32.mrb[0].mxu0
  %543 = vmatprep.mubr.bf16.mxu0 0
  %544 = vmatmul.mubr.bf16.gmra.mrb[0].mxu0 %v245
  %v545 = vpop.f32.mrb[0].mxu0
  %v546 = vadd.f32 0.0, %v545
  %v547 = vpop.f32.mrb[0].mxu0
  %v548 = vpop.f32.mrb[0].mxu0
  %v549 = vadd.f32 0.0, %v548
  %v550 = vpop.f32.mrb[0].mxu0
  %551 = vmatprep.mubr.bf16.mxu0 0
  %552 = vmatmul.mubr.bf16.gmra.mrb[0].mxu0 %v246
  %v553 = vpop.f32.mrb[0].mxu0
  %v554 = vadd.f32 0.0, %v553
  %v555 = vpop.f32.mrb[0].mxu0
  %v556 = vpop.f32.mrb[0].mxu0
  %v557 = vadd.f32 0.0, %v556
  %v558 = vpop.f32.mrb[0].mxu0
  %559 = vmatprep.mubr.bf16.mxu0 0
  %560 = vmatmul.mubr.bf16.gmra.mrb[0].mxu0 %v247
  %v561 = vpop.f32.mrb[0].mxu0
  %v562 = vadd.f32 0.0, %v561
  %v563 = vpop.f32.mrb[0].mxu0
  %v564 = vpop.f32.mrb[0].mxu0
  %v565 = vadd.f32 0.0, %v564
  %v566 = vpop.f32.mrb[0].mxu0
  %567 = vmatprep.mubr.bf16.mxu0 0
  %568 = vmatmul.mubr.bf16.gmra.mrb[0].mxu0 %v248
  %v569 = vpop.f32.mrb[0].mxu0
  %v570 = vadd.f32 0.0, %v569
  %v571 = vpop.f32.mrb[0].mxu0
  %v572 = vpop.f32.mrb[0].mxu0
  %v573 = vadd.f32 0.0, %v572
  %v574 = vpop.f32.mrb[0].mxu0
  %575 = vmatprep.mubr.bf16.mxu0 0
  %576 = vmatmul.mubr.bf16.gmra.mrb[0].mxu0 %v249
  %v577 = vpop.f32.mrb[0].mxu0
  %v578 = vadd.f32 0.0, %v577
  %v579 = vpop.f32.mrb[0].mxu0
  %v580 = vpop.f32.mrb[0].mxu0
  %v581 = vadd.f32 0.0, %v580
  %v582 = vpop.f32.mrb[0].mxu0
  %583 = vmatprep.mubr.bf16.mxu0 0
  %584 = vmatmul.mubr.bf16.gmra.mrb[0].mxu0 %v250
  %v585 = vpop.f32.mrb[0].mxu0
  %v586 = vadd.f32 0.0, %v585
  %v587 = vpop.f32.mrb[0].mxu0
  %v588 = vpop.f32.mrb[0].mxu0
  %v589 = vadd.f32 0.0, %v588
  %v590 = vpop.f32.mrb[0].mxu0
  %591 = vmatprep.mubr.bf16.mxu0 0
  %592 = vmatmul.mubr.bf16.gmra.mrb[0].mxu0 %v251
  %v593 = vpop.f32.mrb[0].mxu0
  %v594 = vadd.f32 0.0, %v593
  %v595 = vpop.f32.mrb[0].mxu0
  %v596 = vpop.f32.mrb[0].mxu0
  %v597 = vadd.f32 0.0, %v596
  %v598 = vpop.f32.mrb[0].mxu0
  %599 = vmatprep.mubr.bf16.mxu0 0
  %600 = vmatmul.mubr.bf16.gmra.mrb[0].mxu0 %v252
  %v601 = vpop.f32.mrb[0].mxu0
  %v602 = vadd.f32 0.0, %v601
  %v603 = vpop.f32.mrb[0].mxu0
  %v604 = vpop.f32.mrb[0].mxu0
  %v605 = vadd.f32 0.0, %v604
  %v606 = vpop.f32.mrb[0].mxu0
  %607 = vmatprep.mubr.bf16.mxu0 0
  %608 = vmatmul.mubr.bf16.gmra.mrb[0].mxu0 %v253
  %v609 = vpop.f32.mrb[0].mxu0
  %v610 = vadd.f32 0.0, %v609
  %v611 = vpop.f32.mrb[0].mxu0
  %v612 = vpop.f32.mrb[0].mxu0
  %v613 = vadd.f32 0.0, %v612
  %v614 = vpop.f32.mrb[0].mxu0
  %615 = vmatprep.mubr.bf16.mxu0 0
  %616 = vmatmul.mubr.bf16.gmra.mrb[0].mxu0 %v254
  %v617 = vpop.f32.mrb[0].mxu0
  %v618 = vadd.f32 0.0, %v617
  %v619 = vpop.f32.mrb[0].mxu0
  %v620 = vpop.f32.mrb[0].mxu0
  %v621 = vadd.f32 0.0, %v620
  %v622 = vpop.f32.mrb[0].mxu0
  %623 = vdwg.mxu0
  %v624 = vmax.f32 %v370, %v434
  %v625 = vmax.f32 %v373, %v437
  %v626 = vmax.f32 %v378, %v442
  %v627 = vmax.f32 %v381, %v445
  %v628 = vmax.f32 %v386, %v450
  %v629 = vmax.f32 %v389, %v453
  %v630 = vmax.f32 %v394, %v458
  %v631 = vmax.f32 %v397, %v461
  %v632 = vmax.f32 %v402, %v466
  %v633 = vmax.f32 %v405, %v469
  %v634 = vmax.f32 %v410, %v474
  %v635 = vmax.f32 %v413, %v477
  %v636 = vmax.f32 %v418, %v482
  %v637 = vmax.f32 %v421, %v485
  %v638 = vmax.f32 %v426, %v490
  %v639 = vmax.f32 %v429, %v493
  %v640 = vmax.f32 %v498, %v562
  %v641 = vmax.f32 %v501, %v565
  %v642 = vmax.f32 %v506, %v570
  %v643 = vmax.f32 %v509, %v573
  %v644 = vmax.f32 %v514, %v578
  %v645 = vmax.f32 %v517, %v581
  %v646 = vmax.f32 %v522, %v586
  %v647 = vmax.f32 %v525, %v589
  %v648 = vmax.f32 %v530, %v594
  %v649 = vmax.f32 %v533, %v597
  %v650 = vmax.f32 %v538, %v602
  %v651 = vmax.f32 %v541, %v605
  %v652 = vmax.f32 %v546, %v610
  %v653 = vmax.f32 %v549, %v613
  %v654 = vmax.f32 %v554, %v618
  %v655 = vmax.f32 %v557, %v621
  %v656 = vmax.f32 %v624, %v640
  %v657 = vmax.f32 %v625, %v641
  %v658 = vmax.f32 %v626, %v642
  %v659 = vmax.f32 %v627, %v643
  %v660 = vmax.f32 %v628, %v644
  %v661 = vmax.f32 %v629, %v645
  %v662 = vmax.f32 %v630, %v646
  %v663 = vmax.f32 %v631, %v647
  %v664 = vmax.f32 %v632, %v648
  %v665 = vmax.f32 %v633, %v649
  %v666 = vmax.f32 %v634, %v650
  %v667 = vmax.f32 %v635, %v651
  %v668 = vmax.f32 %v636, %v652
  %v669 = vmax.f32 %v637, %v653
  %v670 = vmax.f32 %v638, %v654
  %v671 = vmax.f32 %v639, %v655
  %v672 = vld [vmem:[%s2] sm:$0x1]
  %v674 = vlaneseq
  %v675 = vshrl.u32 %v674, 7
  %v676 = vsub.s32 0, %v675
  %v677 = vrot.slane %v672, %v676
  %v679 = vadd.f32 %v656, %v677
  %v680 = vadd.f32 %v657, %v677
  %v681 = vadd.f32 %v658, %v677
  %v682 = vadd.f32 %v659, %v677
  %v683 = vadd.f32 %v660, %v677
  %v684 = vadd.f32 %v661, %v677
  %v685 = vadd.f32 %v662, %v677
  %v686 = vadd.f32 %v663, %v677
  %v687 = vadd.f32 %v664, %v677
  %v688 = vadd.f32 %v665, %v677
  %v689 = vadd.f32 %v666, %v677
  %v690 = vadd.f32 %v667, %v677
  %v691 = vadd.f32 %v668, %v677
  %v692 = vadd.f32 %v669, %v677
  %v693 = vadd.f32 %v670, %v677
  %v694 = vadd.f32 %v671, %v677
  %vm695 = vcmp.gt.f32.partialorder %v679, 0.0
  %vm696 = vcmp.gt.f32.partialorder %v680, 0.0
  %vm697 = vcmp.gt.f32.partialorder %v681, 0.0
  %vm698 = vcmp.gt.f32.partialorder %v682, 0.0
  %vm699 = vcmp.gt.f32.partialorder %v683, 0.0
  %vm700 = vcmp.gt.f32.partialorder %v684, 0.0
  %vm701 = vcmp.gt.f32.partialorder %v685, 0.0
  %vm702 = vcmp.gt.f32.partialorder %v686, 0.0
  %vm703 = vcmp.gt.f32.partialorder %v687, 0.0
  %vm704 = vcmp.gt.f32.partialorder %v688, 0.0
  %vm705 = vcmp.gt.f32.partialorder %v689, 0.0
  %vm706 = vcmp.gt.f32.partialorder %v690, 0.0
  %vm707 = vcmp.gt.f32.partialorder %v691, 0.0
  %vm708 = vcmp.gt.f32.partialorder %v692, 0.0
  %vm709 = vcmp.gt.f32.partialorder %v693, 0.0
  %vm710 = vcmp.gt.f32.partialorder %v694, 0.0
  %v711 = vmul.f32 %v679, 0.01
  %v712 = vmul.f32 %v680, 0.01
  %v713 = vmul.f32 %v681, 0.01
  %v714 = vmul.f32 %v682, 0.01
  %v715 = vmul.f32 %v683, 0.01
  %v716 = vmul.f32 %v684, 0.01
  %v717 = vmul.f32 %v685, 0.01
  %v718 = vmul.f32 %v686, 0.01
  %v719 = vmul.f32 %v687, 0.01
  %v720 = vmul.f32 %v688, 0.01
  %v721 = vmul.f32 %v689, 0.01
  %v722 = vmul.f32 %v690, 0.01
  %v723 = vmul.f32 %v691, 0.01
  %v724 = vmul.f32 %v692, 0.01
  %v725 = vmul.f32 %v693, 0.01
  %v726 = vmul.f32 %v694, 0.01
  %v727 = vsel %vm695, %v679, %v711
  %v728 = vsel %vm696, %v680, %v712
  %v729 = vsel %vm697, %v681, %v713
  %v730 = vsel %vm698, %v682, %v714
  %v731 = vsel %vm699, %v683, %v715
  %v732 = vsel %vm700, %v684, %v716
  %v733 = vsel %vm701, %v685, %v717
  %v734 = vsel %vm702, %v686, %v718
  %v735 = vsel %vm703, %v687, %v719
  %v736 = vsel %vm704, %v688, %v720
  %v737 = vsel %vm705, %v689, %v721
  %v738 = vsel %vm706, %v690, %v722
  %v739 = vsel %vm707, %v691, %v723
  %v740 = vsel %vm708, %v692, %v724
  %v741 = vsel %vm709, %v693, %v725
  %v742 = vsel %vm710, %v694, %v726
  %743 = vst [vmem:[%s3] sm:$0xff] %v727
  %744 = vst [vmem:[%s3 + $0x8] sm:$0xff] %v728
  %745 = vst [vmem:[%s3 + $0x10] sm:$0xff] %v729
  %746 = vst [vmem:[%s3 + $0x18] sm:$0xff] %v730
  %747 = vst [vmem:[%s3 + $0x20] sm:$0xff] %v731
  %748 = vst [vmem:[%s3 + $0x28] sm:$0xff] %v732
  %749 = vst [vmem:[%s3 + $0x30] sm:$0xff] %v733
  %750 = vst [vmem:[%s3 + $0x38] sm:$0xff] %v734
  %751 = vst [vmem:[%s3 + $0x40] sm:$0xff] %v735
  %752 = vst [vmem:[%s3 + $0x48] sm:$0xff] %v736
  %753 = vst [vmem:[%s3 + $0x50] sm:$0xff] %v737
  %754 = vst [vmem:[%s3 + $0x58] sm:$0xff] %v738
  %755 = vst [vmem:[%s3 + $0x60] sm:$0xff] %v739
  %756 = vst [vmem:[%s3 + $0x68] sm:$0xff] %v740
  %757 = vst [vmem:[%s3 + $0x70] sm:$0xff] %v741
  %758 = vst [vmem:[%s3 + $0x78] sm:$0xff] %v742
  // Predicated region
  $region14: #{_lambda_.4} parent=0 // pred_check
    _
  $region15: #{_lambda_.4} parent=0 // pred_check_branch
    %760 = sbr.rel (0) target = $region17
  $region16: #{_lambda_.4} parent=0 // pred_region
    _
  $region17: #{_lambda_.4} parent=0 // pred_fallthru
    _
  // Predicated region
  $region18: #{_lambda_.4} parent=0 // pred_check
    _
  $region19: #{_lambda_.4} parent=0 // pred_check_branch
    %762 = sbr.rel (0) target = $region21
  $region20: #{_lambda_.4} parent=0 // pred_region
    _
  $region21: #{_lambda_.4} parent=0 // pred_fallthru
    _

// kernel: _lambda_.5
$region0: #{_lambda_.5}
  #allocation0 [shape = 'u32[]', space=smem, size = 0x4, offset = 0x4, fixed_abs, tag = 'smem constant byte address 0x4 - core index']
  #allocation1 [shape = 'u32[144,128]{1,0:T(1,128)}', space=vmem, size = 0x12000, scoped, tag = 'internal scratch']
  %s0 = inlined_call_operand.vmem [shape: bf16[128,640], index: 0, kind: input, shape index: {}]
  %s1 = inlined_call_operand.vmem [shape: bf16[640,128], index: 1, kind: input, shape index: {}]
  %s2 = inlined_call_operand.vmem [shape: f32[1,128], index: 2, kind: input, shape index: {}]
  %s3 = inlined_call_operand.vmem [shape: f32[32,128], index: 3, kind: output, shape index: {}]
  %s4 = sld [smem:[#allocation0]]
  $region22: #{_lambda_.5} parent=0
    _
  %s6 = ssub.s32 1, %s4
  %s7 = scalar_select 0, %s6, %s4
  // Predicated region
  $region2: #{_lambda_.5} parent=0 // pred_check
    _
  $region3: #{_lambda_.5} parent=0 // pred_check_branch
    %9 = sbr.rel (0) target = $region5
  $region4: #{_lambda_.5} parent=0 // pred_region
    _
  $region5: #{_lambda_.5} parent=0 // pred_fallthru
    _
  // Predicated region
  $region6: #{_lambda_.5} parent=0 // pred_check
    _
  $region7: #{_lambda_.5} parent=0 // pred_check_branch
    %11 = sbr.rel (0) target = $region9
  $region8: #{_lambda_.5} parent=0 // pred_region
    _
  $region9: #{_lambda_.5} parent=0 // pred_fallthru
    _
  // Predicated region
  $region10: #{_lambda_.5} parent=0 // pred_check
    _
  $region11: #{_lambda_.5} parent=0 // pred_check_branch
    %13 = sbr.rel (0) target = $region13
  $region12: #{_lambda_.5} parent=0 // pred_region
    _
  $region13: #{_lambda_.5} parent=0 // pred_fallthru
    _
  %v15 = vld [vmem:[%s0] sm:$0xff]
  %v16 = vld [vmem:[%s0 + $0x8] sm:$0xff]
  %v17 = vld [vmem:[%s0 + $0x10] sm:$0xf]
  %v18 = vld [vmem:[%s0 + $0x14] sm:$0xff]
  %v19 = vld [vmem:[%s0 + $0x1c] sm:$0xff]
  %v20 = vld [vmem:[%s0 + $0x24] sm:$0xf]
  %v21 = vld [vmem:[%s0 + $0x28] sm:$0xff]
  %v22 = vld [vmem:[%s0 + $0x30] sm:$0xff]
  %v23 = vld [vmem:[%s0 + $0x38] sm:$0xf]
  %v24 = vld [vmem:[%s0 + $0x3c] sm:$0xff]
  %v25 = vld [vmem:[%s0 + $0x44] sm:$0xff]
  %v26 = vld [vmem:[%s0 + $0x4c] sm:$0xf]
  %v27 = vld [vmem:[%s0 + $0x50] sm:$0xff]
  %v28 = vld [vmem:[%s0 + $0x58] sm:$0xff]
  %v29 = vld [vmem:[%s0 + $0x60] sm:$0xf]
  %v30 = vld [vmem:[%s0 + $0x64] sm:$0xff]
  %v31 = vld [vmem:[%s0 + $0x6c] sm:$0xff]
  %v32 = vld [vmem:[%s0 + $0x74] sm:$0xf]
  %v33 = vld [vmem:[%s0 + $0x78] sm:$0xff]
  %v34 = vld [vmem:[%s0 + $0x80] sm:$0xff]
  %v35 = vld [vmem:[%s0 + $0x88] sm:$0xf]
  %v36 = vld [vmem:[%s0 + $0x8c] sm:$0xff]
  %v37 = vld [vmem:[%s0 + $0x94] sm:$0xff]
  %v38 = vld [vmem:[%s0 + $0x9c] sm:$0xf]
  %v39 = vld [vmem:[%s0 + $0xa0] sm:$0xff]
  %v40 = vld [vmem:[%s0 + $0xa8] sm:$0xff]
  %v41 = vld [vmem:[%s0 + $0xb0] sm:$0xf]
  %v42 = vld [vmem:[%s0 + $0xb4] sm:$0xff]
  %v43 = vld [vmem:[%s0 + $0xbc] sm:$0xff]
  %v44 = vld [vmem:[%s0 + $0xc4] sm:$0xf]
  %v45 = vld [vmem:[%s0 + $0xc8] sm:$0xff]
  %v46 = vld [vmem:[%s0 + $0xd0] sm:$0xff]
  %v47 = vld [vmem:[%s0 + $0xd8] sm:$0xf]
  %v48 = vld [vmem:[%s0 + $0xdc] sm:$0xff]
  %v49 = vld [vmem:[%s0 + $0xe4] sm:$0xff]
  %v50 = vld [vmem:[%s0 + $0xec] sm:$0xf]
  %v51 = vld [vmem:[%s0 + $0xf0] sm:$0xff]
  %v52 = vld [vmem:[%s0 + $0xf8] sm:$0xff]
  %v53 = vld [vmem:[%s0 + $0x100] sm:$0xf]
  %v54 = vld [vmem:[%s0 + $0x104] sm:$0xff]
  %v55 = vld [vmem:[%s0 + $0x10c] sm:$0xff]
  %v56 = vld [vmem:[%s0 + $0x114] sm:$0xf]
  %v57 = vld [vmem:[%s0 + $0x118] sm:$0xff]
  %v58 = vld [vmem:[%s0 + $0x120] sm:$0xff]
  %v59 = vld [vmem:[%s0 + $0x128] sm:$0xf]
  %v60 = vld [vmem:[%s0 + $0x12c] sm:$0xff]
  %v61 = vld [vmem:[%s0 + $0x134] sm:$0xff]
  %v62 = vld [vmem:[%s0 + $0x13c] sm:$0xf]
  %v63 = vld [vmem:[%s1] sm:$0xf]
  %v64 = vld [vmem:[%s1 + $0x4] sm:$0xf]
  %v65 = vld [vmem:[%s1 + $0x8] sm:$0xf]
  %v66 = vld [vmem:[%s1 + $0xc] sm:$0xf]
  %v67 = vld [vmem:[%s1 + $0x10] sm:$0xf]
  %v68 = vld [vmem:[%s1 + $0x14] sm:$0xf]
  %v69 = vld [vmem:[%s1 + $0x18] sm:$0xf]
  %v70 = vld [vmem:[%s1 + $0x1c] sm:$0xf]
  %v71 = vld [vmem:[%s1 + $0x20] sm:$0xf]
  %v72 = vld [vmem:[%s1 + $0x24] sm:$0xf]
  %v73 = vld [vmem:[%s1 + $0x28] sm:$0xf]
  %v74 = vld [vmem:[%s1 + $0x2c] sm:$0xf]
  %v75 = vld [vmem:[%s1 + $0x30] sm:$0xf]
  %v76 = vld [vmem:[%s1 + $0x34] sm:$0xf]
  %v77 = vld [vmem:[%s1 + $0x38] sm:$0xf]
  %v78 = vld [vmem:[%s1 + $0x3c] sm:$0xf]
  %v79 = vld [vmem:[%s1 + $0x40] sm:$0xf]
  %v80 = vld [vmem:[%s1 + $0x44] sm:$0xf]
  %v81 = vld [vmem:[%s1 + $0x48] sm:$0xf]
  %v82 = vld [vmem:[%s1 + $0x4c] sm:$0xf]
  %v83 = vld [vmem:[%s1 + $0x50] sm:$0xf]
  %v84 = vld [vmem:[%s1 + $0x54] sm:$0xf]
  %v85 = vld [vmem:[%s1 + $0x58] sm:$0xf]
  %v86 = vld [vmem:[%s1 + $0x5c] sm:$0xf]
  %v87 = vld [vmem:[%s1 + $0x60] sm:$0xf]
  %v88 = vld [vmem:[%s1 + $0x64] sm:$0xf]
  %v89 = vld [vmem:[%s1 + $0x68] sm:$0xf]
  %v90 = vld [vmem:[%s1 + $0x6c] sm:$0xf]
  %v91 = vld [vmem:[%s1 + $0x70] sm:$0xf]
  %v92 = vld [vmem:[%s1 + $0x74] sm:$0xf]
  %v93 = vld [vmem:[%s1 + $0x78] sm:$0xf]
  %v94 = vld [vmem:[%s1 + $0x7c] sm:$0xf]
  %v95 = vld [vmem:[%s1 + $0x80] sm:$0xf]
  %v96 = vld [vmem:[%s1 + $0x84] sm:$0xf]
  %v97 = vld [vmem:[%s1 + $0x88] sm:$0xf]
  %v98 = vld [vmem:[%s1 + $0x8c] sm:$0xf]
  %v99 = vld [vmem:[%s1 + $0x90] sm:$0xf]
  %v100 = vld [vmem:[%s1 + $0x94] sm:$0xf]
  %v101 = vld [vmem:[%s1 + $0x98] sm:$0xf]
  %v102 = vld [vmem:[%s1 + $0x9c] sm:$0xf]
  %v103 = vld [vmem:[%s1 + $0xa0] sm:$0xf]
  %v104 = vld [vmem:[%s1 + $0xa4] sm:$0xf]
  %v105 = vld [vmem:[%s1 + $0xa8] sm:$0xf]
  %v106 = vld [vmem:[%s1 + $0xac] sm:$0xf]
  %v107 = vld [vmem:[%s1 + $0xb0] sm:$0xf]
  %v108 = vld [vmem:[%s1 + $0xb4] sm:$0xf]
  %v109 = vld [vmem:[%s1 + $0xb8] sm:$0xf]
  %v110 = vld [vmem:[%s1 + $0xbc] sm:$0xf]
  %v111 = vld [vmem:[%s1 + $0xc0] sm:$0xf]
  %v112 = vld [vmem:[%s1 + $0xc4] sm:$0xf]
  %v113 = vld [vmem:[%s1 + $0xc8] sm:$0xf]
  %v114 = vld [vmem:[%s1 + $0xcc] sm:$0xf]
  %v115 = vld [vmem:[%s1 + $0xd0] sm:$0xf]
  %v116 = vld [vmem:[%s1 + $0xd4] sm:$0xf]
  %v117 = vld [vmem:[%s1 + $0xd8] sm:$0xf]
  %v118 = vld [vmem:[%s1 + $0xdc] sm:$0xf]
  %v119 = vld [vmem:[%s1 + $0xe0] sm:$0xf]
  %v120 = vld [vmem:[%s1 + $0xe4] sm:$0xf]
  %v121 = vld [vmem:[%s1 + $0xe8] sm:$0xf]
  %v122 = vld [vmem:[%s1 + $0xec] sm:$0xf]
  %v123 = vld [vmem:[%s1 + $0xf0] sm:$0xf]
  %v124 = vld [vmem:[%s1 + $0xf4] sm:$0xf]
  %v125 = vld [vmem:[%s1 + $0xf8] sm:$0xf]
  %v126 = vld [vmem:[%s1 + $0xfc] sm:$0xf]
  %v127 = vld [vmem:[%s1 + $0x100] sm:$0xf]
  %v128 = vld [vmem:[%s1 + $0x104] sm:$0xf]
  %v129 = vld [vmem:[%s1 + $0x108] sm:$0xf]
  %v130 = vld [vmem:[%s1 + $0x10c] sm:$0xf]
  %v131 = vld [vmem:[%s1 + $0x110] sm:$0xf]
  %v132 = vld [vmem:[%s1 + $0x114] sm:$0xf]
  %v133 = vld [vmem:[%s1 + $0x118] sm:$0xf]
  %v134 = vld [vmem:[%s1 + $0x11c] sm:$0xf]
  %v135 = vld [vmem:[%s1 + $0x120] sm:$0xf]
  %v136 = vld [vmem:[%s1 + $0x124] sm:$0xf]
  %v137 = vld [vmem:[%s1 + $0x128] sm:$0xf]
  %v138 = vld [vmem:[%s1 + $0x12c] sm:$0xf]
  %v139 = vld [vmem:[%s1 + $0x130] sm:$0xf]
  %v140 = vld [vmem:[%s1 + $0x134] sm:$0xf]
  %v141 = vld [vmem:[%s1 + $0x138] sm:$0xf]
  %v142 = vld [vmem:[%s1 + $0x13c] sm:$0xf]
  %v191 = vunpack.c.l.b16 %v15
  %v192 = vunpack.c.h.b16 %v15
  %v193 = vunpack.c.l.b16 %v16
  %v194 = vunpack.c.h.b16 %v16
  %v195 = vunpack.c.l.b16 %v17
  %v196 = vunpack.c.l.b16 %v18
  %v197 = vunpack.c.h.b16 %v18
  %v198 = vunpack.c.l.b16 %v19
  %v199 = vunpack.c.h.b16 %v19
  %v200 = vunpack.c.l.b16 %v20
  %v201 = vunpack.c.l.b16 %v21
  %v202 = vunpack.c.h.b16 %v21
  %v203 = vunpack.c.l.b16 %v22
  %v204 = vunpack.c.h.b16 %v22
  %v205 = vunpack.c.l.b16 %v23
  %v206 = vunpack.c.l.b16 %v24
  %v207 = vunpack.c.h.b16 %v24
  %v208 = vunpack.c.l.b16 %v25
  %v209 = vunpack.c.h.b16 %v25
  %v210 = vunpack.c.l.b16 %v26
  %v211 = vunpack.c.l.b16 %v27
  %v212 = vunpack.c.h.b16 %v27
  %v213 = vunpack.c.l.b16 %v28
  %v214 = vunpack.c.h.b16 %v28
  %v215 = vunpack.c.l.b16 %v29
  %v216 = vunpack.c.l.b16 %v30
  %v217 = vunpack.c.h.b16 %v30
  %v218 = vunpack.c.l.b16 %v31
  %v219 = vunpack.c.h.b16 %v31
  %v220 = vunpack.c.l.b16 %v32
  %v221 = vunpack.c.l.b16 %v33
  %v222 = vunpack.c.h.b16 %v33
  %v223 = vunpack.c.l.b16 %v34
  %v224 = vunpack.c.h.b16 %v34
  %v225 = vunpack.c.l.b16 %v35
  %v226 = vunpack.c.l.b16 %v36
  %v227 = vunpack.c.h.b16 %v36
  %v228 = vunpack.c.l.b16 %v37
  %v229 = vunpack.c.h.b16 %v37
  %v230 = vunpack.c.l.b16 %v38
  %v231 = vunpack.c.l.b16 %v39
  %v232 = vunpack.c.h.b16 %v39
  %v233 = vunpack.c.l.b16 %v40
  %v234 = vunpack.c.h.b16 %v40
  %v235 = vunpack.c.l.b16 %v41
  %v236 = vunpack.c.l.b16 %v42
  %v237 = vunpack.c.h.b16 %v42
  %v238 = vunpack.c.l.b16 %v43
  %v239 = vunpack.c.h.b16 %v43
  %v240 = vunpack.c.l.b16 %v44
  %v241 = vunpack.c.l.b16 %v45
  %v242 = vunpack.c.h.b16 %v45
  %v243 = vunpack.c.l.b16 %v46
  %v244 = vunpack.c.h.b16 %v46
  %v245 = vunpack.c.l.b16 %v47
  %v246 = vunpack.c.l.b16 %v48
  %v247 = vunpack.c.h.b16 %v48
  %v248 = vunpack.c.l.b16 %v49
  %v249 = vunpack.c.h.b16 %v49
  %v250 = vunpack.c.l.b16 %v50
  %v251 = vunpack.c.l.b16 %v51
  %v252 = vunpack.c.h.b16 %v51
  %v253 = vunpack.c.l.b16 %v52
  %v254 = vunpack.c.h.b16 %v52
  %v255 = vunpack.c.l.b16 %v53
  %v256 = vunpack.c.l.b16 %v54
  %v257 = vunpack.c.h.b16 %v54
  %v258 = vunpack.c.l.b16 %v55
  %v259 = vunpack.c.h.b16 %v55
  %v260 = vunpack.c.l.b16 %v56
  %v261 = vunpack.c.l.b16 %v57
  %v262 = vunpack.c.h.b16 %v57
  %v263 = vunpack.c.l.b16 %v58
  %v264 = vunpack.c.h.b16 %v58
  %v265 = vunpack.c.l.b16 %v59
  %v266 = vunpack.c.l.b16 %v60
  %v267 = vunpack.c.h.b16 %v60
  %v268 = vunpack.c.l.b16 %v61
  %v269 = vunpack.c.h.b16 %v61
  %v270 = vunpack.c.l.b16 %v62
  %v271 = vpack.c.b16 %v196, %v191
  %v272 = vpack.c.b16 %v197, %v192
  %v273 = vpack.c.b16 %v198, %v193
  %v274 = vpack.c.b16 %v199, %v194
  %v275 = vpack.c.b16 %v200, %v195
  %v276 = vpack.c.b16 %v206, %v201
  %v277 = vpack.c.b16 %v207, %v202
  %v278 = vpack.c.b16 %v208, %v203
  %v279 = vpack.c.b16 %v209, %v204
  %v280 = vpack.c.b16 %v210, %v205
  %v281 = vpack.c.b16 %v216, %v211
  %v282 = vpack.c.b16 %v217, %v212
  %v283 = vpack.c.b16 %v218, %v213
  %v284 = vpack.c.b16 %v219, %v214
  %v285 = vpack.c.b16 %v220, %v215
  %v286 = vpack.c.b16 %v226, %v221
  %v287 = vpack.c.b16 %v227, %v222
  %v288 = vpack.c.b16 %v228, %v223
  %v289 = vpack.c.b16 %v229, %v224
  %v290 = vpack.c.b16 %v230, %v225
  %v291 = vpack.c.b16 %v236, %v231
  %v292 = vpack.c.b16 %v237, %v232
  %v293 = vpack.c.b16 %v238, %v233
  %v294 = vpack.c.b16 %v239, %v234
  %v295 = vpack.c.b16 %v240, %v235
  %v296 = vpack.c.b16 %v246, %v241
  %v297 = vpack.c.b16 %v247, %v242
  %v298 = vpack.c.b16 %v248, %v243
  %v299 = vpack.c.b16 %v249, %v244
  %v300 = vpack.c.b16 %v250, %v245
  %v301 = vpack.c.b16 %v256, %v251
  %v302 = vpack.c.b16 %v257, %v252
  %v303 = vpack.c.b16 %v258, %v253
  %v304 = vpack.c.b16 %v259, %v254
  %v305 = vpack.c.b16 %v260, %v255
  %v306 = vpack.c.b16 %v266, %v261
  %v307 = vpack.c.b16 %v267, %v262
  %v308 = vpack.c.b16 %v268, %v263
  %v309 = vpack.c.b16 %v269, %v264
  %v310 = vpack.c.b16 %v270, %v265
  %v431 = vunpack.c.l.b16 %v63
  %v432 = vunpack.c.l.b16 %v64
  %v433 = vunpack.c.l.b16 %v65
  %v434 = vunpack.c.l.b16 %v66
  %v435 = vunpack.c.l.b16 %v67
  %v436 = vunpack.c.l.b16 %v68
  %v437 = vunpack.c.l.b16 %v69
  %v438 = vunpack.c.l.b16 %v70
  %v439 = vunpack.c.l.b16 %v71
  %v440 = vunpack.c.l.b16 %v72
  %v441 = vunpack.c.l.b16 %v73
  %v442 = vunpack.c.l.b16 %v74
  %v443 = vunpack.c.l.b16 %v75
  %v444 = vunpack.c.l.b16 %v76
  %v445 = vunpack.c.l.b16 %v77
  %v446 = vunpack.c.l.b16 %v78
  %v447 = vunpack.c.l.b16 %v79
  %v448 = vunpack.c.l.b16 %v80
  %v449 = vunpack.c.l.b16 %v81
  %v450 = vunpack.c.l.b16 %v82
  %v451 = vunpack.c.l.b16 %v83
  %v452 = vunpack.c.l.b16 %v84
  %v453 = vunpack.c.l.b16 %v85
  %v454 = vunpack.c.l.b16 %v86
  %v455 = vunpack.c.l.b16 %v87
  %v456 = vunpack.c.l.b16 %v88
  %v457 = vunpack.c.l.b16 %v89
  %v458 = vunpack.c.l.b16 %v90
  %v459 = vunpack.c.l.b16 %v91
  %v460 = vunpack.c.l.b16 %v92
  %v461 = vunpack.c.l.b16 %v93
  %v462 = vunpack.c.l.b16 %v94
  %v463 = vunpack.c.l.b16 %v95
  %v464 = vunpack.c.l.b16 %v96
  %v465 = vunpack.c.l.b16 %v97
  %v466 = vunpack.c.l.b16 %v98
  %v467 = vunpack.c.l.b16 %v99
  %v468 = vunpack.c.l.b16 %v100
  %v469 = vunpack.c.l.b16 %v101
  %v470 = vunpack.c.l.b16 %v102
  %v471 = vunpack.c.l.b16 %v103
  %v472 = vunpack.c.l.b16 %v104
  %v473 = vunpack.c.l.b16 %v105
  %v474 = vunpack.c.l.b16 %v106
  %v475 = vunpack.c.l.b16 %v107
  %v476 = vunpack.c.l.b16 %v108
  %v477 = vunpack.c.l.b16 %v109
  %v478 = vunpack.c.l.b16 %v110
  %v479 = vunpack.c.l.b16 %v111
  %v480 = vunpack.c.l.b16 %v112
  %v481 = vunpack.c.l.b16 %v113
  %v482 = vunpack.c.l.b16 %v114
  %v483 = vunpack.c.l.b16 %v115
  %v484 = vunpack.c.l.b16 %v116
  %v485 = vunpack.c.l.b16 %v117
  %v486 = vunpack.c.l.b16 %v118
  %v487 = vunpack.c.l.b16 %v119
  %v488 = vunpack.c.l.b16 %v120
  %v489 = vunpack.c.l.b16 %v121
  %v490 = vunpack.c.l.b16 %v122
  %v491 = vunpack.c.l.b16 %v123
  %v492 = vunpack.c.l.b16 %v124
  %v493 = vunpack.c.l.b16 %v125
  %v494 = vunpack.c.l.b16 %v126
  %v495 = vunpack.c.l.b16 %v127
  %v496 = vunpack.c.l.b16 %v128
  %v497 = vunpack.c.l.b16 %v129
  %v498 = vunpack.c.l.b16 %v130
  %v499 = vunpack.c.l.b16 %v131
  %v500 = vunpack.c.l.b16 %v132
  %v501 = vunpack.c.l.b16 %v133
  %v502 = vunpack.c.l.b16 %v134
  %v503 = vunpack.c.l.b16 %v135
  %v504 = vunpack.c.l.b16 %v136
  %v505 = vunpack.c.l.b16 %v137
  %v506 = vunpack.c.l.b16 %v138
  %v507 = vunpack.c.l.b16 %v139
  %v508 = vunpack.c.l.b16 %v140
  %v509 = vunpack.c.l.b16 %v141
  %v510 = vunpack.c.l.b16 %v142
  %v511 = vpack.c.b16 %v432, %v431
  %v512 = vpack.c.b16 %v434, %v433
  %v513 = vpack.c.b16 %v436, %v435
  %v514 = vpack.c.b16 %v438, %v437
  %v515 = vpack.c.b16 %v440, %v439
  %v516 = vpack.c.b16 %v442, %v441
  %v517 = vpack.c.b16 %v444, %v443
  %v518 = vpack.c.b16 %v446, %v445
  %v519 = vpack.c.b16 %v448, %v447
  %v520 = vpack.c.b16 %v450, %v449
  %v521 = vpack.c.b16 %v452, %v451
  %v522 = vpack.c.b16 %v454, %v453
  %v523 = vpack.c.b16 %v456, %v455
  %v524 = vpack.c.b16 %v458, %v457
  %v525 = vpack.c.b16 %v460, %v459
  %v526 = vpack.c.b16 %v462, %v461
  %v527 = vpack.c.b16 %v464, %v463
  %v528 = vpack.c.b16 %v466, %v465
  %v529 = vpack.c.b16 %v468, %v467
  %v530 = vpack.c.b16 %v470, %v469
  %v531 = vpack.c.b16 %v472, %v471
  %v532 = vpack.c.b16 %v474, %v473
  %v533 = vpack.c.b16 %v476, %v475
  %v534 = vpack.c.b16 %v478, %v477
  %v535 = vpack.c.b16 %v480, %v479
  %v536 = vpack.c.b16 %v482, %v481
  %v537 = vpack.c.b16 %v484, %v483
  %v538 = vpack.c.b16 %v486, %v485
  %v539 = vpack.c.b16 %v488, %v487
  %v540 = vpack.c.b16 %v490, %v489
  %v541 = vpack.c.b16 %v492, %v491
  %v542 = vpack.c.b16 %v494, %v493
  %v543 = vpack.c.b16 %v496, %v495
  %v544 = vpack.c.b16 %v498, %v497
  %v545 = vpack.c.b16 %v500, %v499
  %v546 = vpack.c.b16 %v502, %v501
  %v547 = vpack.c.b16 %v504, %v503
  %v548 = vpack.c.b16 %v506, %v505
  %v549 = vpack.c.b16 %v508, %v507
  %v550 = vpack.c.b16 %v510, %v509
  %591 = vmatprep.subr.bf16.mxu0 0
  %592 = vmatpush1.bf16.msra.mxu0 %v511
  %593 = vmatprep.subr.bf16.mxu0 0
  %594 = vmatpush1.bf16.msra.mxu0 %v512
  %595 = vmatprep.subr.bf16.mxu0 0
  %596 = vmatpush1.bf16.msra.mxu0 %v513
  %597 = vmatprep.subr.bf16.mxu0 0
  %598 = vmatpush1.bf16.msra.mxu0 %v514
  %599 = vmatprep.subr.bf16.mxu0 0
  %600 = vmatpush1.bf16.msra.mxu0 %v515
  %601 = vmatprep.subr.bf16.mxu0 0
  %602 = vmatpush1.bf16.msra.mxu0 %v516
  %603 = vmatprep.subr.bf16.mxu0 0
  %604 = vmatpush1.bf16.msra.mxu0 %v517
  %605 = vmatprep.subr.bf16.mxu0 0
  %606 = vmatpush1.bf16.msra.mxu0 %v518
  %607 = vmatprep.subr.bf16.mxu0 0
  %608 = vmatpush1.bf16.msra.mxu0 %v519
  %609 = vmatprep.subr.bf16.mxu0 0
  %610 = vmatpush1.bf16.msra.mxu0 %v520
  %611 = vmatprep.subr.bf16.mxu0 0
  %612 = vmatpush1.bf16.msra.mxu0 %v521
  %613 = vmatprep.subr.bf16.mxu0 0
  %614 = vmatpush1.bf16.msra.mxu0 %v522
  %615 = vmatprep.subr.bf16.mxu0 0
  %616 = vmatpush1.bf16.msra.mxu0 %v523
  %617 = vmatprep.subr.bf16.mxu0 0
  %618 = vmatpush1.bf16.msra.mxu0 %v524
  %619 = vmatprep.subr.bf16.mxu0 0
  %620 = vmatpush1.bf16.msra.mxu0 %v525
  %621 = vmatprep.subr.bf16.mxu0 0
  %622 = vmatpush1.bf16.msra.mxu0 %v526
  %623 = vmatprep.mubr.bf16.mxu0 %v272
  %624 = vmatmul.mubr.bf16.gmra.mrb[0].mxu0 %v271
  %v625 = vpop.f32.mrb[0].mxu0
  %v626 = vadd.f32 0.0, %v625
  %v627 = vpop.f32.mrb[0].mxu0
  %v628 = vpop.f32.mrb[0].mxu0
  %v629 = vadd.f32 0.0, %v628
  %v630 = vpop.f32.mrb[0].mxu0
  %631 = vmatprep.mubr.bf16.mxu0 %v277
  %632 = vmatmul.mubr.bf16.gmra.mrb[0].mxu0 %v276
  %v633 = vpop.f32.mrb[0].mxu0
  %v634 = vadd.f32 0.0, %v633
  %v635 = vpop.f32.mrb[0].mxu0
  %v636 = vpop.f32.mrb[0].mxu0
  %v637 = vadd.f32 0.0, %v636
  %v638 = vpop.f32.mrb[0].mxu0
  %639 = vmatprep.mubr.bf16.mxu0 %v282
  %640 = vmatmul.mubr.bf16.gmra.mrb[0].mxu0 %v281
  %v641 = vpop.f32.mrb[0].mxu0
  %v642 = vadd.f32 0.0, %v641
  %v643 = vpop.f32.mrb[0].mxu0
  %v644 = vpop.f32.mrb[0].mxu0
  %v645 = vadd.f32 0.0, %v644
  %v646 = vpop.f32.mrb[0].mxu0
  %647 = vmatprep.mubr.bf16.mxu0 %v287
  %648 = vmatmul.mubr.bf16.gmra.mrb[0].mxu0 %v286
  %v649 = vpop.f32.mrb[0].mxu0
  %v650 = vadd.f32 0.0, %v649
  %v651 = vpop.f32.mrb[0].mxu0
  %v652 = vpop.f32.mrb[0].mxu0
  %v653 = vadd.f32 0.0, %v652
  %v654 = vpop.f32.mrb[0].mxu0
  %655 = vmatprep.mubr.bf16.mxu0 %v292
  %656 = vmatmul.mubr.bf16.gmra.mrb[0].mxu0 %v291
  %v657 = vpop.f32.mrb[0].mxu0
  %v658 = vadd.f32 0.0, %v657
  %v659 = vpop.f32.mrb[0].mxu0
  %v660 = vpop.f32.mrb[0].mxu0
  %v661 = vadd.f32 0.0, %v660
  %v662 = vpop.f32.mrb[0].mxu0
  %663 = vmatprep.mubr.bf16.mxu0 %v297
  %664 = vmatmul.mubr.bf16.gmra.mrb[0].mxu0 %v296
  %v665 = vpop.f32.mrb[0].mxu0
  %v666 = vadd.f32 0.0, %v665
  %v667 = vpop.f32.mrb[0].mxu0
  %v668 = vpop.f32.mrb[0].mxu0
  %v669 = vadd.f32 0.0, %v668
  %v670 = vpop.f32.mrb[0].mxu0
  %671 = vmatprep.mubr.bf16.mxu0 %v302
  %672 = vmatmul.mubr.bf16.gmra.mrb[0].mxu0 %v301
  %v673 = vpop.f32.mrb[0].mxu0
  %v674 = vadd.f32 0.0, %v673
  %v675 = vpop.f32.mrb[0].mxu0
  %v676 = vpop.f32.mrb[0].mxu0
  %v677 = vadd.f32 0.0, %v676
  %v678 = vpop.f32.mrb[0].mxu0
  %679 = vmatprep.mubr.bf16.mxu0 %v307
  %680 = vmatmul.mubr.bf16.gmra.mrb[0].mxu0 %v306
  %v681 = vpop.f32.mrb[0].mxu0
  %v682 = vadd.f32 0.0, %v681
  %v683 = vpop.f32.mrb[0].mxu0
  %v684 = vpop.f32.mrb[0].mxu0
  %v685 = vadd.f32 0.0, %v684
  %v686 = vpop.f32.mrb[0].mxu0
  %687 = vdwg.mxu0
  %688 = vmatprep.subr.bf16.mxu0 0
  %689 = vmatpush1.bf16.msra.mxu0 %v527
  %690 = vmatprep.subr.bf16.mxu0 0
  %691 = vmatpush1.bf16.msra.mxu0 %v528
  %692 = vmatprep.subr.bf16.mxu0 0
  %693 = vmatpush1.bf16.msra.mxu0 %v529
  %694 = vmatprep.subr.bf16.mxu0 0
  %695 = vmatpush1.bf16.msra.mxu0 %v530
  %696 = vmatprep.subr.bf16.mxu0 0
  %697 = vmatpush1.bf16.msra.mxu0 %v531
  %698 = vmatprep.subr.bf16.mxu0 0
  %699 = vmatpush1.bf16.msra.mxu0 %v532
  %700 = vmatprep.subr.bf16.mxu0 0
  %701 = vmatpush1.bf16.msra.mxu0 %v533
  %702 = vmatprep.subr.bf16.mxu0 0
  %703 = vmatpush1.bf16.msra.mxu0 %v534
  %704 = vmatprep.subr.bf16.mxu0 0
  %705 = vmatpush1.bf16.msra.mxu0 %v535
  %706 = vmatprep.subr.bf16.mxu0 0
  %707 = vmatpush1.bf16.msra.mxu0 %v536
  %708 = vmatprep.subr.bf16.mxu0 0
  %709 = vmatpush1.bf16.msra.mxu0 %v537
  %710 = vmatprep.subr.bf16.mxu0 0
  %711 = vmatpush1.bf16.msra.mxu0 %v538
  %712 = vmatprep.subr.bf16.mxu0 0
  %713 = vmatpush1.bf16.msra.mxu0 %v539
  %714 = vmatprep.subr.bf16.mxu0 0
  %715 = vmatpush1.bf16.msra.mxu0 %v540
  %716 = vmatprep.subr.bf16.mxu0 0
  %717 = vmatpush1.bf16.msra.mxu0 %v541
  %718 = vmatprep.subr.bf16.mxu0 0
  %719 = vmatpush1.bf16.msra.mxu0 %v542
  %720 = vmatprep.mubr.bf16.mxu0 %v274
  %721 = vmatmul.mubr.bf16.gmra.mrb[0].mxu0 %v273
  %v722 = vpop.f32.mrb[0].mxu0
  %v723 = vadd.f32 %v626, %v722
  %v724 = vpop.f32.mrb[0].mxu0
  %v725 = vpop.f32.mrb[0].mxu0
  %v726 = vadd.f32 %v629, %v725
  %v727 = vpop.f32.mrb[0].mxu0
  %728 = vmatprep.mubr.bf16.mxu0 %v279
  %729 = vmatmul.mubr.bf16.gmra.mrb[0].mxu0 %v278
  %v730 = vpop.f32.mrb[0].mxu0
  %v731 = vadd.f32 %v634, %v730
  %v732 = vpop.f32.mrb[0].mxu0
  %v733 = vpop.f32.mrb[0].mxu0
  %v734 = vadd.f32 %v637, %v733
  %v735 = vpop.f32.mrb[0].mxu0
  %736 = vmatprep.mubr.bf16.mxu0 %v284
  %737 = vmatmul.mubr.bf16.gmra.mrb[0].mxu0 %v283
  %v738 = vpop.f32.mrb[0].mxu0
  %v739 = vadd.f32 %v642, %v738
  %v740 = vpop.f32.mrb[0].mxu0
  %v741 = vpop.f32.mrb[0].mxu0
  %v742 = vadd.f32 %v645, %v741
  %v743 = vpop.f32.mrb[0].mxu0
  %744 = vmatprep.mubr.bf16.mxu0 %v289
  %745 = vmatmul.mubr.bf16.gmra.mrb[0].mxu0 %v288
  %v746 = vpop.f32.mrb[0].mxu0
  %v747 = vadd.f32 %v650, %v746
  %v748 = vpop.f32.mrb[0].mxu0
  %v749 = vpop.f32.mrb[0].mxu0
  %v750 = vadd.f32 %v653, %v749
  %v751 = vpop.f32.mrb[0].mxu0
  %752 = vmatprep.mubr.bf16.mxu0 %v294
  %753 = vmatmul.mubr.bf16.gmra.mrb[0].mxu0 %v293
  %v754 = vpop.f32.mrb[0].mxu0
  %v755 = vadd.f32 %v658, %v754
  %v756 = vpop.f32.mrb[0].mxu0
  %v757 = vpop.f32.mrb[0].mxu0
  %v758 = vadd.f32 %v661, %v757
  %v759 = vpop.f32.mrb[0].mxu0
  %760 = vmatprep.mubr.bf16.mxu0 %v299
  %761 = vmatmul.mubr.bf16.gmra.mrb[0].mxu0 %v298
  %v762 = vpop.f32.mrb[0].mxu0
  %v763 = vadd.f32 %v666, %v762
  %v764 = vpop.f32.mrb[0].mxu0
  %v765 = vpop.f32.mrb[0].mxu0
  %v766 = vadd.f32 %v669, %v765
  %v767 = vpop.f32.mrb[0].mxu0
  %768 = vmatprep.mubr.bf16.mxu0 %v304
  %769 = vmatmul.mubr.bf16.gmra.mrb[0].mxu0 %v303
  %v770 = vpop.f32.mrb[0].mxu0
  %v771 = vadd.f32 %v674, %v770
  %v772 = vpop.f32.mrb[0].mxu0
  %v773 = vpop.f32.mrb[0].mxu0
  %v774 = vadd.f32 %v677, %v773
  %v775 = vpop.f32.mrb[0].mxu0
  %776 = vmatprep.mubr.bf16.mxu0 %v309
  %777 = vmatmul.mubr.bf16.gmra.mrb[0].mxu0 %v308
  %v778 = vpop.f32.mrb[0].mxu0
  %v779 = vadd.f32 %v682, %v778
  %v780 = vpop.f32.mrb[0].mxu0
  %v781 = vpop.f32.mrb[0].mxu0
  %v782 = vadd.f32 %v685, %v781
  %v783 = vpop.f32.mrb[0].mxu0
  %784 = vdwg.mxu0
  %785 = vmatprep.subr.bf16.mxu0 0
  %786 = vmatpush1.bf16.msra.mxu0 %v543
  %787 = vmatprep.subr.bf16.mxu0 0
  %788 = vmatpush1.bf16.msra.mxu0 %v544
  %789 = vmatprep.subr.bf16.mxu0 0
  %790 = vmatpush1.bf16.msra.mxu0 %v545
  %791 = vmatprep.subr.bf16.mxu0 0
  %792 = vmatpush1.bf16.msra.mxu0 %v546
  %793 = vmatprep.subr.bf16.mxu0 0
  %794 = vmatpush1.bf16.msra.mxu0 %v547
  %795 = vmatprep.subr.bf16.mxu0 0
  %796 = vmatpush1.bf16.msra.mxu0 %v548
  %797 = vmatprep.subr.bf16.mxu0 0
  %798 = vmatpush1.bf16.msra.mxu0 %v549
  %799 = vmatprep.subr.bf16.mxu0 0
  %800 = vmatpush1.bf16.msra.mxu0 %v550
  %801 = vmatprep.subr.bf16.mxu0 0
  %802 = vmatpush1.bf16.msra.mxu0 0
  %803 = vmatprep.subr.bf16.mxu0 0
  %804 = vmatpush1.bf16.msra.mxu0 0
  %805 = vmatprep.subr.bf16.mxu0 0
  %806 = vmatpush1.bf16.msra.mxu0 0
  %807 = vmatprep.subr.bf16.mxu0 0
  %808 = vmatpush1.bf16.msra.mxu0 0
  %809 = vmatprep.subr.bf16.mxu0 0
  %810 = vmatpush1.bf16.msra.mxu0 0
  %811 = vmatprep.subr.bf16.mxu0 0
  %812 = vmatpush1.bf16.msra.mxu0 0
  %813 = vmatprep.subr.bf16.mxu0 0
  %814 = vmatpush1.bf16.msra.mxu0 0
  %815 = vmatprep.subr.bf16.mxu0 0
  %816 = vmatpush1.bf16.msra.mxu0 0
  %817 = vmatprep.mubr.bf16.mxu0 0
  %818 = vmatmul.mubr.bf16.gmra.mrb[0].mxu0 %v275
  %v819 = vpop.f32.mrb[0].mxu0
  %v820 = vadd.f32 %v723, %v819
  %v821 = vpop.f32.mrb[0].mxu0
  %v822 = vpop.f32.mrb[0].mxu0
  %v823 = vadd.f32 %v726, %v822
  %v824 = vpop.f32.mrb[0].mxu0
  %825 = vmatprep.mubr.bf16.mxu0 0
  %826 = vmatmul.mubr.bf16.gmra.mrb[0].mxu0 %v280
  %v827 = vpop.f32.mrb[0].mxu0
  %v828 = vadd.f32 %v731, %v827
  %v829 = vpop.f32.mrb[0].mxu0
  %v830 = vpop.f32.mrb[0].mxu0
  %v831 = vadd.f32 %v734, %v830
  %v832 = vpop.f32.mrb[0].mxu0
  %833 = vmatprep.mubr.bf16.mxu0 0
  %834 = vmatmul.mubr.bf16.gmra.mrb[0].mxu0 %v285
  %v835 = vpop.f32.mrb[0].mxu0
  %v836 = vadd.f32 %v739, %v835
  %v837 = vpop.f32.mrb[0].mxu0
  %v838 = vpop.f32.mrb[0].mxu0
  %v839 = vadd.f32 %v742, %v838
  %v840 = vpop.f32.mrb[0].mxu0
  %841 = vmatprep.mubr.bf16.mxu0 0
  %842 = vmatmul.mubr.bf16.gmra.mrb[0].mxu0 %v290
  %v843 = vpop.f32.mrb[0].mxu0
  %v844 = vadd.f32 %v747, %v843
  %v845 = vpop.f32.mrb[0].mxu0
  %v846 = vpop.f32.mrb[0].mxu0
  %v847 = vadd.f32 %v750, %v846
  %v848 = vpop.f32.mrb[0].mxu0
  %849 = vmatprep.mubr.bf16.mxu0 0
  %850 = vmatmul.mubr.bf16.gmra.mrb[0].mxu0 %v295
  %v851 = vpop.f32.mrb[0].mxu0
  %v852 = vadd.f32 %v755, %v851
  %v853 = vpop.f32.mrb[0].mxu0
  %v854 = vpop.f32.mrb[0].mxu0
  %v855 = vadd.f32 %v758, %v854
  %v856 = vpop.f32.mrb[0].mxu0
  %857 = vmatprep.mubr.bf16.mxu0 0
  %858 = vmatmul.mubr.bf16.gmra.mrb[0].mxu0 %v300
  %v859 = vpop.f32.mrb[0].mxu0
  %v860 = vadd.f32 %v763, %v859
  %v861 = vpop.f32.mrb[0].mxu0
  %v862 = vpop.f32.mrb[0].mxu0
  %v863 = vadd.f32 %v766, %v862
  %v864 = vpop.f32.mrb[0].mxu0
  %865 = vmatprep.mubr.bf16.mxu0 0
  %866 = vmatmul.mubr.bf16.gmra.mrb[0].mxu0 %v305
  %v867 = vpop.f32.mrb[0].mxu0
  %v868 = vadd.f32 %v771, %v867
  %v869 = vpop.f32.mrb[0].mxu0
  %v870 = vpop.f32.mrb[0].mxu0
  %v871 = vadd.f32 %v774, %v870
  %v872 = vpop.f32.mrb[0].mxu0
  %873 = vmatprep.mubr.bf16.mxu0 0
  %874 = vmatmul.mubr.bf16.gmra.mrb[0].mxu0 %v310
  %v875 = vpop.f32.mrb[0].mxu0
  %v876 = vadd.f32 %v779, %v875
  %v877 = vpop.f32.mrb[0].mxu0
  %v878 = vpop.f32.mrb[0].mxu0
  %v879 = vadd.f32 %v782, %v878
  %v880 = vpop.f32.mrb[0].mxu0
  %881 = vdwg.mxu0
  %v882 = vmax.f32 %v820, %v836
  %v883 = vmax.f32 %v823, %v839
  %v884 = vmax.f32 %v828, %v844
  %v885 = vmax.f32 %v831, %v847
  %v886 = vmax.f32 %v852, %v868
  %v887 = vmax.f32 %v855, %v871
  %v888 = vmax.f32 %v860, %v876
  %v889 = vmax.f32 %v863, %v879
  %v890 = vmax.f32 %v882, %v886
  %v891 = vmax.f32 %v883, %v887
  %v892 = vmax.f32 %v884, %v888
  %v893 = vmax.f32 %v885, %v889
  %v894 = vld [vmem:[%s2] sm:$0x1]
  %v896 = vlaneseq
  %v897 = vshrl.u32 %v896, 7
  %v898 = vsub.s32 0, %v897
  %v899 = vrot.slane %v894, %v898
  %v901 = vadd.f32 %v890, %v899
  %v902 = vadd.f32 %v891, %v899
  %v903 = vadd.f32 %v892, %v899
  %v904 = vadd.f32 %v893, %v899
  %vm905 = vcmp.gt.f32.partialorder %v901, 0.0
  %vm906 = vcmp.gt.f32.partialorder %v902, 0.0
  %vm907 = vcmp.gt.f32.partialorder %v903, 0.0
  %vm908 = vcmp.gt.f32.partialorder %v904, 0.0
  %v909 = vmul.f32 %v901, 0.01
  %v910 = vmul.f32 %v902, 0.01
  %v911 = vmul.f32 %v903, 0.01
  %v912 = vmul.f32 %v904, 0.01
  %v913 = vsel %vm905, %v901, %v909
  %v914 = vsel %vm906, %v902, %v910
  %v915 = vsel %vm907, %v903, %v911
  %v916 = vsel %vm908, %v904, %v912
  %917 = vst [vmem:[%s3] sm:$0xff] %v913
  %918 = vst [vmem:[%s3 + $0x8] sm:$0xff] %v914
  %919 = vst [vmem:[%s3 + $0x10] sm:$0xff] %v915
  %920 = vst [vmem:[%s3 + $0x18] sm:$0xff] %v916
  // Predicated region
  $region14: #{_lambda_.5} parent=0 // pred_check
    _
  $region15: #{_lambda_.5} parent=0 // pred_check_branch
    %922 = sbr.rel (0) target = $region17
  $region16: #{_lambda_.5} parent=0 // pred_region
    _
  $region17: #{_lambda_.5} parent=0 // pred_fallthru
    _
  // Predicated region
  $region18: #{_lambda_.5} parent=0 // pred_check
    _
  $region19: #{_lambda_.5} parent=0 // pred_check_branch
    %924 = sbr.rel (0) target = $region21
  $region20: #{_lambda_.5} parent=0 // pred_region
    _
  $region21: #{_lambda_.5} parent=0 // pred_fallthru
    _

// kernel: _lambda_.6
$region0: #{_lambda_.6}
  #allocation0 [shape = 'u32[]', space=smem, size = 0x4, offset = 0x4, fixed_abs, tag = 'smem constant byte address 0x4 - core index']
  #allocation1 [shape = 'u32[144,128]{1,0:T(1,128)}', space=vmem, size = 0x12000, scoped, tag = 'internal scratch']
  %s0 = inlined_call_operand.vmem [shape: bf16[32,512], index: 0, kind: input, shape index: {}]
  %s1 = inlined_call_operand.vmem [shape: bf16[512,128], index: 1, kind: input, shape index: {}]
  %s2 = inlined_call_operand.vmem [shape: f32[1,128], index: 2, kind: input, shape index: {}]
  %s3 = inlined_call_operand.vmem [shape: f32[8,128], index: 3, kind: output, shape index: {}]
  %s4 = sld [smem:[#allocation0]]
  $region22: #{_lambda_.6} parent=0
    _
  %s6 = ssub.s32 1, %s4
  %s7 = scalar_select 0, %s6, %s4
  // Predicated region
  $region2: #{_lambda_.6} parent=0 // pred_check
    _
  $region3: #{_lambda_.6} parent=0 // pred_check_branch
    %9 = sbr.rel (0) target = $region5
  $region4: #{_lambda_.6} parent=0 // pred_region
    _
  $region5: #{_lambda_.6} parent=0 // pred_fallthru
    _
  // Predicated region
  $region6: #{_lambda_.6} parent=0 // pred_check
    _
  $region7: #{_lambda_.6} parent=0 // pred_check_branch
    %11 = sbr.rel (0) target = $region9
  $region8: #{_lambda_.6} parent=0 // pred_region
    _
  $region9: #{_lambda_.6} parent=0 // pred_fallthru
    _
  // Predicated region
  $region10: #{_lambda_.6} parent=0 // pred_check
    _
  $region11: #{_lambda_.6} parent=0 // pred_check_branch
    %13 = sbr.rel (0) target = $region13
  $region12: #{_lambda_.6} parent=0 // pred_region
    _
  $region13: #{_lambda_.6} parent=0 // pred_fallthru
    _
  %v15 = vld [vmem:[%s0] sm:$0xff]
  %v16 = vld [vmem:[%s0 + $0x8] sm:$0xff]
  %v17 = vld [vmem:[%s0 + $0x10] sm:$0xff]
  %v18 = vld [vmem:[%s0 + $0x18] sm:$0xff]
  %v19 = vld [vmem:[%s0 + $0x20] sm:$0xff]
  %v20 = vld [vmem:[%s0 + $0x28] sm:$0xff]
  %v21 = vld [vmem:[%s0 + $0x30] sm:$0xff]
  %v22 = vld [vmem:[%s0 + $0x38] sm:$0xff]
  %v23 = vld [vmem:[%s1] sm:$0xf]
  %v24 = vld [vmem:[%s1 + $0x4] sm:$0xf]
  %v25 = vld [vmem:[%s1 + $0x8] sm:$0xf]
  %v26 = vld [vmem:[%s1 + $0xc] sm:$0xf]
  %v27 = vld [vmem:[%s1 + $0x10] sm:$0xf]
  %v28 = vld [vmem:[%s1 + $0x14] sm:$0xf]
  %v29 = vld [vmem:[%s1 + $0x18] sm:$0xf]
  %v30 = vld [vmem:[%s1 + $0x1c] sm:$0xf]
  %v31 = vld [vmem:[%s1 + $0x20] sm:$0xf]
  %v32 = vld [vmem:[%s1 + $0x24] sm:$0xf]
  %v33 = vld [vmem:[%s1 + $0x28] sm:$0xf]
  %v34 = vld [vmem:[%s1 + $0x2c] sm:$0xf]
  %v35 = vld [vmem:[%s1 + $0x30] sm:$0xf]
  %v36 = vld [vmem:[%s1 + $0x34] sm:$0xf]
  %v37 = vld [vmem:[%s1 + $0x38] sm:$0xf]
  %v38 = vld [vmem:[%s1 + $0x3c] sm:$0xf]
  %v39 = vld [vmem:[%s1 + $0x40] sm:$0xf]
  %v40 = vld [vmem:[%s1 + $0x44] sm:$0xf]
  %v41 = vld [vmem:[%s1 + $0x48] sm:$0xf]
  %v42 = vld [vmem:[%s1 + $0x4c] sm:$0xf]
  %v43 = vld [vmem:[%s1 + $0x50] sm:$0xf]
  %v44 = vld [vmem:[%s1 + $0x54] sm:$0xf]
  %v45 = vld [vmem:[%s1 + $0x58] sm:$0xf]
  %v46 = vld [vmem:[%s1 + $0x5c] sm:$0xf]
  %v47 = vld [vmem:[%s1 + $0x60] sm:$0xf]
  %v48 = vld [vmem:[%s1 + $0x64] sm:$0xf]
  %v49 = vld [vmem:[%s1 + $0x68] sm:$0xf]
  %v50 = vld [vmem:[%s1 + $0x6c] sm:$0xf]
  %v51 = vld [vmem:[%s1 + $0x70] sm:$0xf]
  %v52 = vld [vmem:[%s1 + $0x74] sm:$0xf]
  %v53 = vld [vmem:[%s1 + $0x78] sm:$0xf]
  %v54 = vld [vmem:[%s1 + $0x7c] sm:$0xf]
  %v55 = vld [vmem:[%s1 + $0x80] sm:$0xf]
  %v56 = vld [vmem:[%s1 + $0x84] sm:$0xf]
  %v57 = vld [vmem:[%s1 + $0x88] sm:$0xf]
  %v58 = vld [vmem:[%s1 + $0x8c] sm:$0xf]
  %v59 = vld [vmem:[%s1 + $0x90] sm:$0xf]
  %v60 = vld [vmem:[%s1 + $0x94] sm:$0xf]
  %v61 = vld [vmem:[%s1 + $0x98] sm:$0xf]
  %v62 = vld [vmem:[%s1 + $0x9c] sm:$0xf]
  %v63 = vld [vmem:[%s1 + $0xa0] sm:$0xf]
  %v64 = vld [vmem:[%s1 + $0xa4] sm:$0xf]
  %v65 = vld [vmem:[%s1 + $0xa8] sm:$0xf]
  %v66 = vld [vmem:[%s1 + $0xac] sm:$0xf]
  %v67 = vld [vmem:[%s1 + $0xb0] sm:$0xf]
  %v68 = vld [vmem:[%s1 + $0xb4] sm:$0xf]
  %v69 = vld [vmem:[%s1 + $0xb8] sm:$0xf]
  %v70 = vld [vmem:[%s1 + $0xbc] sm:$0xf]
  %v71 = vld [vmem:[%s1 + $0xc0] sm:$0xf]
  %v72 = vld [vmem:[%s1 + $0xc4] sm:$0xf]
  %v73 = vld [vmem:[%s1 + $0xc8] sm:$0xf]
  %v74 = vld [vmem:[%s1 + $0xcc] sm:$0xf]
  %v75 = vld [vmem:[%s1 + $0xd0] sm:$0xf]
  %v76 = vld [vmem:[%s1 + $0xd4] sm:$0xf]
  %v77 = vld [vmem:[%s1 + $0xd8] sm:$0xf]
  %v78 = vld [vmem:[%s1 + $0xdc] sm:$0xf]
  %v79 = vld [vmem:[%s1 + $0xe0] sm:$0xf]
  %v80 = vld [vmem:[%s1 + $0xe4] sm:$0xf]
  %v81 = vld [vmem:[%s1 + $0xe8] sm:$0xf]
  %v82 = vld [vmem:[%s1 + $0xec] sm:$0xf]
  %v83 = vld [vmem:[%s1 + $0xf0] sm:$0xf]
  %v84 = vld [vmem:[%s1 + $0xf4] sm:$0xf]
  %v85 = vld [vmem:[%s1 + $0xf8] sm:$0xf]
  %v86 = vld [vmem:[%s1 + $0xfc] sm:$0xf]
  %v95 = vunpack.c.l.b16 %v15
  %v96 = vunpack.c.h.b16 %v15
  %v97 = vunpack.c.l.b16 %v16
  %v98 = vunpack.c.h.b16 %v16
  %v99 = vunpack.c.l.b16 %v17
  %v100 = vunpack.c.h.b16 %v17
  %v101 = vunpack.c.l.b16 %v18
  %v102 = vunpack.c.h.b16 %v18
  %v103 = vunpack.c.l.b16 %v19
  %v104 = vunpack.c.h.b16 %v19
  %v105 = vunpack.c.l.b16 %v20
  %v106 = vunpack.c.h.b16 %v20
  %v107 = vunpack.c.l.b16 %v21
  %v108 = vunpack.c.h.b16 %v21
  %v109 = vunpack.c.l.b16 %v22
  %v110 = vunpack.c.h.b16 %v22
  %v111 = vpack.c.b16 %v99, %v95
  %v112 = vpack.c.b16 %v100, %v96
  %v113 = vpack.c.b16 %v101, %v97
  %v114 = vpack.c.b16 %v102, %v98
  %v115 = vpack.c.b16 %v107, %v103
  %v116 = vpack.c.b16 %v108, %v104
  %v117 = vpack.c.b16 %v109, %v105
  %v118 = vpack.c.b16 %v110, %v106
  %v191 = vunpack.c.l.b16 %v23
  %v192 = vunpack.c.l.b16 %v24
  %v193 = vunpack.c.l.b16 %v25
  %v194 = vunpack.c.l.b16 %v26
  %v195 = vunpack.c.l.b16 %v27
  %v196 = vunpack.c.l.b16 %v28
  %v197 = vunpack.c.l.b16 %v29
  %v198 = vunpack.c.l.b16 %v30
  %v199 = vunpack.c.l.b16 %v31
  %v200 = vunpack.c.l.b16 %v32
  %v201 = vunpack.c.l.b16 %v33
  %v202 = vunpack.c.l.b16 %v34
  %v203 = vunpack.c.l.b16 %v35
  %v204 = vunpack.c.l.b16 %v36
  %v205 = vunpack.c.l.b16 %v37
  %v206 = vunpack.c.l.b16 %v38
  %v207 = vunpack.c.l.b16 %v39
  %v208 = vunpack.c.l.b16 %v40
  %v209 = vunpack.c.l.b16 %v41
  %v210 = vunpack.c.l.b16 %v42
  %v211 = vunpack.c.l.b16 %v43
  %v212 = vunpack.c.l.b16 %v44
  %v213 = vunpack.c.l.b16 %v45
  %v214 = vunpack.c.l.b16 %v46
  %v215 = vunpack.c.l.b16 %v47
  %v216 = vunpack.c.l.b16 %v48
  %v217 = vunpack.c.l.b16 %v49
  %v218 = vunpack.c.l.b16 %v50
  %v219 = vunpack.c.l.b16 %v51
  %v220 = vunpack.c.l.b16 %v52
  %v221 = vunpack.c.l.b16 %v53
  %v222 = vunpack.c.l.b16 %v54
  %v223 = vunpack.c.l.b16 %v55
  %v224 = vunpack.c.l.b16 %v56
  %v225 = vunpack.c.l.b16 %v57
  %v226 = vunpack.c.l.b16 %v58
  %v227 = vunpack.c.l.b16 %v59
  %v228 = vunpack.c.l.b16 %v60
  %v229 = vunpack.c.l.b16 %v61
  %v230 = vunpack.c.l.b16 %v62
  %v231 = vunpack.c.l.b16 %v63
  %v232 = vunpack.c.l.b16 %v64
  %v233 = vunpack.c.l.b16 %v65
  %v234 = vunpack.c.l.b16 %v66
  %v235 = vunpack.c.l.b16 %v67
  %v236 = vunpack.c.l.b16 %v68
  %v237 = vunpack.c.l.b16 %v69
  %v238 = vunpack.c.l.b16 %v70
  %v239 = vunpack.c.l.b16 %v71
  %v240 = vunpack.c.l.b16 %v72
  %v241 = vunpack.c.l.b16 %v73
  %v242 = vunpack.c.l.b16 %v74
  %v243 = vunpack.c.l.b16 %v75
  %v244 = vunpack.c.l.b16 %v76
  %v245 = vunpack.c.l.b16 %v77
  %v246 = vunpack.c.l.b16 %v78
  %v247 = vunpack.c.l.b16 %v79
  %v248 = vunpack.c.l.b16 %v80
  %v249 = vunpack.c.l.b16 %v81
  %v250 = vunpack.c.l.b16 %v82
  %v251 = vunpack.c.l.b16 %v83
  %v252 = vunpack.c.l.b16 %v84
  %v253 = vunpack.c.l.b16 %v85
  %v254 = vunpack.c.l.b16 %v86
  %v255 = vpack.c.b16 %v192, %v191
  %v256 = vpack.c.b16 %v194, %v193
  %v257 = vpack.c.b16 %v196, %v195
  %v258 = vpack.c.b16 %v198, %v197
  %v259 = vpack.c.b16 %v200, %v199
  %v260 = vpack.c.b16 %v202, %v201
  %v261 = vpack.c.b16 %v204, %v203
  %v262 = vpack.c.b16 %v206, %v205
  %v263 = vpack.c.b16 %v208, %v207
  %v264 = vpack.c.b16 %v210, %v209
  %v265 = vpack.c.b16 %v212, %v211
  %v266 = vpack.c.b16 %v214, %v213
  %v267 = vpack.c.b16 %v216, %v215
  %v268 = vpack.c.b16 %v218, %v217
  %v269 = vpack.c.b16 %v220, %v219
  %v270 = vpack.c.b16 %v222, %v221
  %v271 = vpack.c.b16 %v224, %v223
  %v272 = vpack.c.b16 %v226, %v225
  %v273 = vpack.c.b16 %v228, %v227
  %v274 = vpack.c.b16 %v230, %v229
  %v275 = vpack.c.b16 %v232, %v231
  %v276 = vpack.c.b16 %v234, %v233
  %v277 = vpack.c.b16 %v236, %v235
  %v278 = vpack.c.b16 %v238, %v237
  %v279 = vpack.c.b16 %v240, %v239
  %v280 = vpack.c.b16 %v242, %v241
  %v281 = vpack.c.b16 %v244, %v243
  %v282 = vpack.c.b16 %v246, %v245
  %v283 = vpack.c.b16 %v248, %v247
  %v284 = vpack.c.b16 %v250, %v249
  %v285 = vpack.c.b16 %v252, %v251
  %v286 = vpack.c.b16 %v254, %v253
  %319 = vmatprep.subr.bf16.mxu0 0
  %320 = vmatpush1.bf16.msra.mxu0 %v255
  %321 = vmatprep.subr.bf16.mxu0 0
  %322 = vmatpush1.bf16.msra.mxu0 %v256
  %323 = vmatprep.subr.bf16.mxu0 0
  %324 = vmatpush1.bf16.msra.mxu0 %v257
  %325 = vmatprep.subr.bf16.mxu0 0
  %326 = vmatpush1.bf16.msra.mxu0 %v258
  %327 = vmatprep.subr.bf16.mxu0 0
  %328 = vmatpush1.bf16.msra.mxu0 %v259
  %329 = vmatprep.subr.bf16.mxu0 0
  %330 = vmatpush1.bf16.msra.mxu0 %v260
  %331 = vmatprep.subr.bf16.mxu0 0
  %332 = vmatpush1.bf16.msra.mxu0 %v261
  %333 = vmatprep.subr.bf16.mxu0 0
  %334 = vmatpush1.bf16.msra.mxu0 %v262
  %335 = vmatprep.subr.bf16.mxu0 0
  %336 = vmatpush1.bf16.msra.mxu0 %v263
  %337 = vmatprep.subr.bf16.mxu0 0
  %338 = vmatpush1.bf16.msra.mxu0 %v264
  %339 = vmatprep.subr.bf16.mxu0 0
  %340 = vmatpush1.bf16.msra.mxu0 %v265
  %341 = vmatprep.subr.bf16.mxu0 0
  %342 = vmatpush1.bf16.msra.mxu0 %v266
  %343 = vmatprep.subr.bf16.mxu0 0
  %344 = vmatpush1.bf16.msra.mxu0 %v267
  %345 = vmatprep.subr.bf16.mxu0 0
  %346 = vmatpush1.bf16.msra.mxu0 %v268
  %347 = vmatprep.subr.bf16.mxu0 0
  %348 = vmatpush1.bf16.msra.mxu0 %v269
  %349 = vmatprep.subr.bf16.mxu0 0
  %350 = vmatpush1.bf16.msra.mxu0 %v270
  %351 = vmatprep.mubr.bf16.mxu0 %v112
  %352 = vmatmul.mubr.bf16.gmra.mrb[0].mxu0 %v111
  %v353 = vpop.f32.mrb[0].mxu0
  %v354 = vadd.f32 0.0, %v353
  %v355 = vpop.f32.mrb[0].mxu0
  %v356 = vpop.f32.mrb[0].mxu0
  %v357 = vadd.f32 0.0, %v356
  %v358 = vpop.f32.mrb[0].mxu0
  %359 = vmatprep.mubr.bf16.mxu0 %v116
  %360 = vmatmul.mubr.bf16.gmra.mrb[0].mxu0 %v115
  %v361 = vpop.f32.mrb[0].mxu0
  %v362 = vadd.f32 0.0, %v361
  %v363 = vpop.f32.mrb[0].mxu0
  %v364 = vpop.f32.mrb[0].mxu0
  %v365 = vadd.f32 0.0, %v364
  %v366 = vpop.f32.mrb[0].mxu0
  %367 = vdwg.mxu0
  %368 = vmatprep.subr.bf16.mxu0 0
  %369 = vmatpush1.bf16.msra.mxu0 %v271
  %370 = vmatprep.subr.bf16.mxu0 0
  %371 = vmatpush1.bf16.msra.mxu0 %v272
  %372 = vmatprep.subr.bf16.mxu0 0
  %373 = vmatpush1.bf16.msra.mxu0 %v273
  %374 = vmatprep.subr.bf16.mxu0 0
  %375 = vmatpush1.bf16.msra.mxu0 %v274
  %376 = vmatprep.subr.bf16.mxu0 0
  %377 = vmatpush1.bf16.msra.mxu0 %v275
  %378 = vmatprep.subr.bf16.mxu0 0
  %379 = vmatpush1.bf16.msra.mxu0 %v276
  %380 = vmatprep.subr.bf16.mxu0 0
  %381 = vmatpush1.bf16.msra.mxu0 %v277
  %382 = vmatprep.subr.bf16.mxu0 0
  %383 = vmatpush1.bf16.msra.mxu0 %v278
  %384 = vmatprep.subr.bf16.mxu0 0
  %385 = vmatpush1.bf16.msra.mxu0 %v279
  %386 = vmatprep.subr.bf16.mxu0 0
  %387 = vmatpush1.bf16.msra.mxu0 %v280
  %388 = vmatprep.subr.bf16.mxu0 0
  %389 = vmatpush1.bf16.msra.mxu0 %v281
  %390 = vmatprep.subr.bf16.mxu0 0
  %391 = vmatpush1.bf16.msra.mxu0 %v282
  %392 = vmatprep.subr.bf16.mxu0 0
  %393 = vmatpush1.bf16.msra.mxu0 %v283
  %394 = vmatprep.subr.bf16.mxu0 0
  %395 = vmatpush1.bf16.msra.mxu0 %v284
  %396 = vmatprep.subr.bf16.mxu0 0
  %397 = vmatpush1.bf16.msra.mxu0 %v285
  %398 = vmatprep.subr.bf16.mxu0 0
  %399 = vmatpush1.bf16.msra.mxu0 %v286
  %400 = vmatprep.mubr.bf16.mxu0 %v114
  %401 = vmatmul.mubr.bf16.gmra.mrb[0].mxu0 %v113
  %v402 = vpop.f32.mrb[0].mxu0
  %v403 = vadd.f32 %v354, %v402
  %v404 = vpop.f32.mrb[0].mxu0
  %v405 = vpop.f32.mrb[0].mxu0
  %v406 = vadd.f32 %v357, %v405
  %v407 = vpop.f32.mrb[0].mxu0
  %408 = vmatprep.mubr.bf16.mxu0 %v118
  %409 = vmatmul.mubr.bf16.gmra.mrb[0].mxu0 %v117
  %v410 = vpop.f32.mrb[0].mxu0
  %v411 = vadd.f32 %v362, %v410
  %v412 = vpop.f32.mrb[0].mxu0
  %v413 = vpop.f32.mrb[0].mxu0
  %v414 = vadd.f32 %v365, %v413
  %v415 = vpop.f32.mrb[0].mxu0
  %416 = vdwg.mxu0
  %v417 = vmax.f32 %v403, %v406
  %v418 = vmax.f32 %v411, %v414
  %v419 = vmax.f32 %v417, %v418
  %v420 = vld [vmem:[%s2] sm:$0x1]
  %v422 = vlaneseq
  %v423 = vshrl.u32 %v422, 7
  %v424 = vsub.s32 0, %v423
  %v425 = vrot.slane %v420, %v424
  %v427 = vadd.f32 %v419, %v425
  %vm428 = vcmp.gt.f32.partialorder %v427, 0.0
  %v429 = vmul.f32 %v427, 0.01
  %v430 = vsel %vm428, %v427, %v429
  %431 = vst [vmem:[%s3] sm:$0xff] %v430
  // Predicated region
  $region14: #{_lambda_.6} parent=0 // pred_check
    _
  $region15: #{_lambda_.6} parent=0 // pred_check_branch
    %433 = sbr.rel (0) target = $region17
  $region16: #{_lambda_.6} parent=0 // pred_region
    _
  $region17: #{_lambda_.6} parent=0 // pred_fallthru
    _
  // Predicated region
  $region18: #{_lambda_.6} parent=0 // pred_check
    _
  $region19: #{_lambda_.6} parent=0 // pred_check_branch
    %435 = sbr.rel (0) target = $region21
  $region20: #{_lambda_.6} parent=0 // pred_region
    _
  $region21: #{_lambda_.6} parent=0 // pred_fallthru
    _

// kernel: _lambda_.7
$region0: #{_lambda_.7}
  #allocation0 [shape = 'u32[]', space=smem, size = 0x4, offset = 0x4, fixed_abs, tag = 'smem constant byte address 0x4 - core index']
  #allocation1 [shape = 'u32[144,128]{1,0:T(1,128)}', space=vmem, size = 0x12000, scoped, tag = 'internal scratch']
  %s0 = inlined_call_operand.vmem [shape: f32[2,128], index: 0, kind: input, shape index: {}]
  %s1 = inlined_call_operand.vmem [shape: bf16[128,128], index: 1, kind: input, shape index: {}]
  %s2 = inlined_call_operand.vmem [shape: f32[1,128], index: 2, kind: input, shape index: {}]
  %s3 = inlined_call_operand.vmem [shape: f32[1,128], index: 3, kind: input, shape index: {}, may-alias: {3,7}]
  %s4 = inlined_call_operand.vmem [shape: f32[1,128], index: 4, kind: input, shape index: {}, may-alias: {4,8}]
  %s5 = inlined_call_operand.vmem [shape: bf16[128,128], index: 5, kind: input, shape index: {}]
  %s6 = inlined_call_operand.vmem [shape: f32[1,128], index: 6, kind: input, shape index: {}]
  %s7 = inlined_call_operand.vmem [shape: f32[1,128], index: 7, kind: input, shape index: {}, may-alias: {3,7}]
  %s8 = inlined_call_operand.vmem [shape: f32[1,128], index: 8, kind: input, shape index: {}, may-alias: {4,8}]
  %s9 = inlined_call_operand.vmem [shape: bf16[128,128], index: 9, kind: input, shape index: {}]
  %s10 = inlined_call_operand.vmem [shape: f32[1,128], index: 10, kind: input, shape index: {}]
  %s11 = inlined_call_operand.vmem [shape: bf16[128,128], index: 11, kind: input, shape index: {}]
  %s12 = inlined_call_operand.vmem [shape: f32[1,128], index: 12, kind: input, shape index: {}]
  %s13 = inlined_call_operand.vmem [shape: f32[2,128], index: 13, kind: output, shape index: {}]
  %s14 = sld [smem:[#allocation0]]
  $region62: #{_lambda_.7} parent=0
    _
  %s16 = ssub.s32 1, %s14
  %s17 = scalar_select 0, %s16, %s14
  // Predicated region
  $region2: #{_lambda_.7} parent=0 // pred_check
    _
  $region3: #{_lambda_.7} parent=0 // pred_check_branch
    %19 = sbr.rel (0) target = $region5
  $region4: #{_lambda_.7} parent=0 // pred_region
    _
  $region5: #{_lambda_.7} parent=0 // pred_fallthru
    _
  // Predicated region
  $region6: #{_lambda_.7} parent=0 // pred_check
    _
  $region7: #{_lambda_.7} parent=0 // pred_check_branch
    %21 = sbr.rel (0) target = $region9
  $region8: #{_lambda_.7} parent=0 // pred_region
    _
  $region9: #{_lambda_.7} parent=0 // pred_fallthru
    _
  // Predicated region
  $region10: #{_lambda_.7} parent=0 // pred_check
    _
  $region11: #{_lambda_.7} parent=0 // pred_check_branch
    %23 = sbr.rel (0) target = $region13
  $region12: #{_lambda_.7} parent=0 // pred_region
    _
  $region13: #{_lambda_.7} parent=0 // pred_fallthru
    _
  // Predicated region
  $region14: #{_lambda_.7} parent=0 // pred_check
    _
  $region15: #{_lambda_.7} parent=0 // pred_check_branch
    %25 = sbr.rel (0) target = $region17
  $region16: #{_lambda_.7} parent=0 // pred_region
    _
  $region17: #{_lambda_.7} parent=0 // pred_fallthru
    _
  // Predicated region
  $region18: #{_lambda_.7} parent=0 // pred_check
    _
  $region19: #{_lambda_.7} parent=0 // pred_check_branch
    %27 = sbr.rel (0) target = $region21
  $region20: #{_lambda_.7} parent=0 // pred_region
    _
  $region21: #{_lambda_.7} parent=0 // pred_fallthru
    _
  // Predicated region
  $region22: #{_lambda_.7} parent=0 // pred_check
    _
  $region23: #{_lambda_.7} parent=0 // pred_check_branch
    %29 = sbr.rel (0) target = $region25
  $region24: #{_lambda_.7} parent=0 // pred_region
    _
  $region25: #{_lambda_.7} parent=0 // pred_fallthru
    _
  // Predicated region
  $region26: #{_lambda_.7} parent=0 // pred_check
    _
  $region27: #{_lambda_.7} parent=0 // pred_check_branch
    %31 = sbr.rel (0) target = $region29
  $region28: #{_lambda_.7} parent=0 // pred_region
    _
  $region29: #{_lambda_.7} parent=0 // pred_fallthru
    _
  // Predicated region
  $region30: #{_lambda_.7} parent=0 // pred_check
    _
  $region31: #{_lambda_.7} parent=0 // pred_check_branch
    %33 = sbr.rel (0) target = $region33
  $region32: #{_lambda_.7} parent=0 // pred_region
    _
  $region33: #{_lambda_.7} parent=0 // pred_fallthru
    _
  // Predicated region
  $region34: #{_lambda_.7} parent=0 // pred_check
    _
  $region35: #{_lambda_.7} parent=0 // pred_check_branch
    %35 = sbr.rel (0) target = $region37
  $region36: #{_lambda_.7} parent=0 // pred_region
    _
  $region37: #{_lambda_.7} parent=0 // pred_fallthru
    _
  // Predicated region
  $region38: #{_lambda_.7} parent=0 // pred_check
    _
  $region39: #{_lambda_.7} parent=0 // pred_check_branch
    %37 = sbr.rel (0) target = $region41
  $region40: #{_lambda_.7} parent=0 // pred_region
    _
  $region41: #{_lambda_.7} parent=0 // pred_fallthru
    _
  // Predicated region
  $region42: #{_lambda_.7} parent=0 // pred_check
    _
  $region43: #{_lambda_.7} parent=0 // pred_check_branch
    %39 = sbr.rel (0) target = $region45
  $region44: #{_lambda_.7} parent=0 // pred_region
    _
  $region45: #{_lambda_.7} parent=0 // pred_fallthru
    _
  // Predicated region
  $region46: #{_lambda_.7} parent=0 // pred_check
    _
  $region47: #{_lambda_.7} parent=0 // pred_check_branch
    %41 = sbr.rel (0) target = $region49
  $region48: #{_lambda_.7} parent=0 // pred_region
    _
  $region49: #{_lambda_.7} parent=0 // pred_fallthru
    _
  // Predicated region
  $region50: #{_lambda_.7} parent=0 // pred_check
    _
  $region51: #{_lambda_.7} parent=0 // pred_check_branch
    %43 = sbr.rel (0) target = $region53
  $region52: #{_lambda_.7} parent=0 // pred_region
    _
  $region53: #{_lambda_.7} parent=0 // pred_fallthru
    _
  %v45 = vld [vmem:[%s0] sm:$0x3]
  %v46 = vpack.c.bf16 %v45, %v45
  %v47 = vld [vmem:[%s1] sm:$0xf]
  %v48 = vld [vmem:[%s1 + $0x4] sm:$0xf]
  %v49 = vld [vmem:[%s1 + $0x8] sm:$0xf]
  %v50 = vld [vmem:[%s1 + $0xc] sm:$0xf]
  %v51 = vld [vmem:[%s1 + $0x10] sm:$0xf]
  %v52 = vld [vmem:[%s1 + $0x14] sm:$0xf]
  %v53 = vld [vmem:[%s1 + $0x18] sm:$0xf]
  %v54 = vld [vmem:[%s1 + $0x1c] sm:$0xf]
  %v55 = vld [vmem:[%s1 + $0x20] sm:$0xf]
  %v56 = vld [vmem:[%s1 + $0x24] sm:$0xf]
  %v57 = vld [vmem:[%s1 + $0x28] sm:$0xf]
  %v58 = vld [vmem:[%s1 + $0x2c] sm:$0xf]
  %v59 = vld [vmem:[%s1 + $0x30] sm:$0xf]
  %v60 = vld [vmem:[%s1 + $0x34] sm:$0xf]
  %v61 = vld [vmem:[%s1 + $0x38] sm:$0xf]
  %v62 = vld [vmem:[%s1 + $0x3c] sm:$0xf]
  %v63 = vld [vmem:[%s2] sm:$0x1]
  %v65 = vlaneseq
  %v66 = vshrl.u32 %v65, 7
  %v67 = vsub.s32 0, %v66
  %v68 = vrot.slane %v63, %v67
  %v86 = vunpack.c.l.b16 %v47
  %v87 = vunpack.c.l.b16 %v48
  %v88 = vunpack.c.l.b16 %v49
  %v89 = vunpack.c.l.b16 %v50
  %v90 = vunpack.c.l.b16 %v51
  %v91 = vunpack.c.l.b16 %v52
  %v92 = vunpack.c.l.b16 %v53
  %v93 = vunpack.c.l.b16 %v54
  %v94 = vunpack.c.l.b16 %v55
  %v95 = vunpack.c.l.b16 %v56
  %v96 = vunpack.c.l.b16 %v57
  %v97 = vunpack.c.l.b16 %v58
  %v98 = vunpack.c.l.b16 %v59
  %v99 = vunpack.c.l.b16 %v60
  %v100 = vunpack.c.l.b16 %v61
  %v101 = vunpack.c.l.b16 %v62
  %v102 = vpack.c.b16 %v87, %v86
  %v103 = vpack.c.b16 %v89, %v88
  %v104 = vpack.c.b16 %v91, %v90
  %v105 = vpack.c.b16 %v93, %v92
  %v106 = vpack.c.b16 %v95, %v94
  %v107 = vpack.c.b16 %v97, %v96
  %v108 = vpack.c.b16 %v99, %v98
  %v109 = vpack.c.b16 %v101, %v100
  %118 = vmatprep.subr.bf16.mxu0 0
  %119 = vmatpush1.bf16.msra.mxu0 %v102
  %120 = vmatprep.subr.bf16.mxu0 0
  %121 = vmatpush1.bf16.msra.mxu0 %v103
  %122 = vmatprep.subr.bf16.mxu0 0
  %123 = vmatpush1.bf16.msra.mxu0 %v104
  %124 = vmatprep.subr.bf16.mxu0 0
  %125 = vmatpush1.bf16.msra.mxu0 %v105
  %126 = vmatprep.subr.bf16.mxu0 0
  %127 = vmatpush1.bf16.msra.mxu0 %v106
  %128 = vmatprep.subr.bf16.mxu0 0
  %129 = vmatpush1.bf16.msra.mxu0 %v107
  %130 = vmatprep.subr.bf16.mxu0 0
  %131 = vmatpush1.bf16.msra.mxu0 %v108
  %132 = vmatprep.subr.bf16.mxu0 0
  %133 = vmatpush1.bf16.msra.mxu0 %v109
  %134 = vmatprep.subr.bf16.mxu0 0
  %135 = vmatpush1.bf16.msra.mxu0 0
  %136 = vmatprep.subr.bf16.mxu0 0
  %137 = vmatpush1.bf16.msra.mxu0 0
  %138 = vmatprep.subr.bf16.mxu0 0
  %139 = vmatpush1.bf16.msra.mxu0 0
  %140 = vmatprep.subr.bf16.mxu0 0
  %141 = vmatpush1.bf16.msra.mxu0 0
  %142 = vmatprep.subr.bf16.mxu0 0
  %143 = vmatpush1.bf16.msra.mxu0 0
  %144 = vmatprep.subr.bf16.mxu0 0
  %145 = vmatpush1.bf16.msra.mxu0 0
  %146 = vmatprep.subr.bf16.mxu0 0
  %147 = vmatpush1.bf16.msra.mxu0 0
  %148 = vmatprep.subr.bf16.mxu0 0
  %149 = vmatpush1.bf16.msra.mxu0 0
  %150 = vmatprep.mubr.bf16.mxu0 0
  %151 = vmatmul.mubr.bf16.gmra.mrb[0].mxu0 %v46
  %v152 = vpop.f32.mrb[0].mxu0
  %v153 = vadd.f32 %v68, %v152
  %v154 = vpop.f32.mrb[0].mxu0
  %v155 = vpop.f32.mrb[0].mxu0
  %v156 = vpop.f32.mrb[0].mxu0
  %157 = vdwg.mxu0
  %v158 = vld [vmem:[%s3] sm:$0x1]
  %v159 = vld [vmem:[%s4] sm:$0x1]
  %160 = vrot.lane.b32.xlu0 %v153, 32
  %v161 = vpop.permute.xlu0 %160
  %v162 = vadd.f32 %v153, %v161
  %163 = vrot.lane.b32.xlu0 %v153, 64
  %v164 = vpop.permute.xlu0 %163
  %v165 = vadd.f32 %v162, %v164
  %166 = vrot.lane.b32.xlu0 %v153, 96
  %v167 = vpop.permute.xlu0 %166
  %v168 = vadd.f32 %v165, %v167
  %vm169 = vcmask 1041408
  %v170 = vsel %vm169, %v168, 0.0
  %v171 = vrot.slane %v170, 4
  %v172 = vadd.f32 %v170, %v171
  %v173 = vrot.slane %v172, 2
  %v174 = vadd.f32 %v172, %v173
  %v175 = vrot.slane %v174, 1
  %v176 = vadd.f32 %v174, %v175
  %v177 = vmul.f32 %v176, 0.125
  %v178 = vsub.f32 %v153, %v177
  %v179 = vmul.f32 %v178, %v178
  %180 = vrot.lane.b32.xlu0 %v179, 32
  %v181 = vpop.permute.xlu0 %180
  %v182 = vadd.f32 %v179, %v181
  %183 = vrot.lane.b32.xlu0 %v179, 64
  %v184 = vpop.permute.xlu0 %183
  %v185 = vadd.f32 %v182, %v184
  %186 = vrot.lane.b32.xlu0 %v179, 96
  %v187 = vpop.permute.xlu0 %186
  %v188 = vadd.f32 %v185, %v187
  %v189 = vsel %vm169, %v188, 0.0
  %v190 = vrot.slane %v189, 4
  %v191 = vadd.f32 %v189, %v190
  %v192 = vrot.slane %v191, 2
  %v193 = vadd.f32 %v191, %v192
  %v194 = vrot.slane %v193, 1
  %v195 = vadd.f32 %v193, %v194
  %v196 = vmul.f32 %v195, 0.125
  %v197 = vadd.f32 %v196, 0.8
  %v198 = vrsqrt.pop %v197
  %v199 = vmul.f32 %v178, %v198
  %v201 = vlaneseq
  %v202 = vshrl.u32 %v201, 7
  %v203 = vsub.s32 0, %v202
  %v204 = vrot.slane %v158, %v203
  %v206 = vmul.f32 %v199, %v204
  %v208 = vlaneseq
  %v209 = vshrl.u32 %v208, 7
  %v210 = vsub.s32 0, %v209
  %v211 = vrot.slane %v159, %v210
  %v213 = vadd.f32 %v206, %v211
  %vm214 = vcmp.gt.f32.partialorder %v213, 0.0
  %v215 = vmul.f32 %v213, 0.01
  %v216 = vsel %vm214, %v213, %v215
  %v217 = vpack.c.bf16 %v216, %v216
  %v218 = vld [vmem:[%s5] sm:$0xf]
  %v219 = vld [vmem:[%s5 + $0x4] sm:$0xf]
  %v220 = vld [vmem:[%s5 + $0x8] sm:$0xf]
  %v221 = vld [vmem:[%s5 + $0xc] sm:$0xf]
  %v222 = vld [vmem:[%s5 + $0x10] sm:$0xf]
  %v223 = vld [vmem:[%s5 + $0x14] sm:$0xf]
  %v224 = vld [vmem:[%s5 + $0x18] sm:$0xf]
  %v225 = vld [vmem:[%s5 + $0x1c] sm:$0xf]
  %v226 = vld [vmem:[%s5 + $0x20] sm:$0xf]
  %v227 = vld [vmem:[%s5 + $0x24] sm:$0xf]
  %v228 = vld [vmem:[%s5 + $0x28] sm:$0xf]
  %v229 = vld [vmem:[%s5 + $0x2c] sm:$0xf]
  %v230 = vld [vmem:[%s5 + $0x30] sm:$0xf]
  %v231 = vld [vmem:[%s5 + $0x34] sm:$0xf]
  %v232 = vld [vmem:[%s5 + $0x38] sm:$0xf]
  %v233 = vld [vmem:[%s5 + $0x3c] sm:$0xf]
  %v234 = vld [vmem:[%s6] sm:$0x1]
  %v236 = vlaneseq
  %v237 = vshrl.u32 %v236, 7
  %v238 = vsub.s32 0, %v237
  %v239 = vrot.slane %v234, %v238
  %v257 = vunpack.c.l.b16 %v218
  %v258 = vunpack.c.l.b16 %v219
  %v259 = vunpack.c.l.b16 %v220
  %v260 = vunpack.c.l.b16 %v221
  %v261 = vunpack.c.l.b16 %v222
  %v262 = vunpack.c.l.b16 %v223
  %v263 = vunpack.c.l.b16 %v224
  %v264 = vunpack.c.l.b16 %v225
  %v265 = vunpack.c.l.b16 %v226
  %v266 = vunpack.c.l.b16 %v227
  %v267 = vunpack.c.l.b16 %v228
  %v268 = vunpack.c.l.b16 %v229
  %v269 = vunpack.c.l.b16 %v230
  %v270 = vunpack.c.l.b16 %v231
  %v271 = vunpack.c.l.b16 %v232
  %v272 = vunpack.c.l.b16 %v233
  %v273 = vpack.c.b16 %v258, %v257
  %v274 = vpack.c.b16 %v260, %v259
  %v275 = vpack.c.b16 %v262, %v261
  %v276 = vpack.c.b16 %v264, %v263
  %v277 = vpack.c.b16 %v266, %v265
  %v278 = vpack.c.b16 %v268, %v267
  %v279 = vpack.c.b16 %v270, %v269
  %v280 = vpack.c.b16 %v272, %v271
  %289 = vmatprep.subr.bf16.mxu0 0
  %290 = vmatpush1.bf16.msra.mxu0 %v273
  %291 = vmatprep.subr.bf16.mxu0 0
  %292 = vmatpush1.bf16.msra.mxu0 %v274
  %293 = vmatprep.subr.bf16.mxu0 0
  %294 = vmatpush1.bf16.msra.mxu0 %v275
  %295 = vmatprep.subr.bf16.mxu0 0
  %296 = vmatpush1.bf16.msra.mxu0 %v276
  %297 = vmatprep.subr.bf16.mxu0 0
  %298 = vmatpush1.bf16.msra.mxu0 %v277
  %299 = vmatprep.subr.bf16.mxu0 0
  %300 = vmatpush1.bf16.msra.mxu0 %v278
  %301 = vmatprep.subr.bf16.mxu0 0
  %302 = vmatpush1.bf16.msra.mxu0 %v279
  %303 = vmatprep.subr.bf16.mxu0 0
  %304 = vmatpush1.bf16.msra.mxu0 %v280
  %305 = vmatprep.subr.bf16.mxu0 0
  %306 = vmatpush1.bf16.msra.mxu0 0
  %307 = vmatprep.subr.bf16.mxu0 0
  %308 = vmatpush1.bf16.msra.mxu0 0
  %309 = vmatprep.subr.bf16.mxu0 0
  %310 = vmatpush1.bf16.msra.mxu0 0
  %311 = vmatprep.subr.bf16.mxu0 0
  %312 = vmatpush1.bf16.msra.mxu0 0
  %313 = vmatprep.subr.bf16.mxu0 0
  %314 = vmatpush1.bf16.msra.mxu0 0
  %315 = vmatprep.subr.bf16.mxu0 0
  %316 = vmatpush1.bf16.msra.mxu0 0
  %317 = vmatprep.subr.bf16.mxu0 0
  %318 = vmatpush1.bf16.msra.mxu0 0
  %319 = vmatprep.subr.bf16.mxu0 0
  %320 = vmatpush1.bf16.msra.mxu0 0
  %321 = vmatprep.mubr.bf16.mxu0 0
  %322 = vmatmul.mubr.bf16.gmra.mrb[0].mxu0 %v217
  %v323 = vpop.f32.mrb[0].mxu0
  %v324 = vadd.f32 %v239, %v323
  %v325 = vpop.f32.mrb[0].mxu0
  %v326 = vpop.f32.mrb[0].mxu0
  %v327 = vpop.f32.mrb[0].mxu0
  %328 = vdwg.mxu0
  %v329 = vld [vmem:[%s7] sm:$0x1]
  %v330 = vld [vmem:[%s8] sm:$0x1]
  %331 = vrot.lane.b32.xlu0 %v324, 32
  %v332 = vpop.permute.xlu0 %331
  %v333 = vadd.f32 %v324, %v332
  %334 = vrot.lane.b32.xlu0 %v324, 64
  %v335 = vpop.permute.xlu0 %334
  %v336 = vadd.f32 %v333, %v335
  %337 = vrot.lane.b32.xlu0 %v324, 96
  %v338 = vpop.permute.xlu0 %337
  %v339 = vadd.f32 %v336, %v338
  %v340 = vsel %vm169, %v339, 0.0
  %v341 = vrot.slane %v340, 4
  %v342 = vadd.f32 %v340, %v341
  %v343 = vrot.slane %v342, 2
  %v344 = vadd.f32 %v342, %v343
  %v345 = vrot.slane %v344, 1
  %v346 = vadd.f32 %v344, %v345
  %v347 = vmul.f32 %v346, 0.125
  %v348 = vsub.f32 %v324, %v347
  %v349 = vmul.f32 %v348, %v348
  %350 = vrot.lane.b32.xlu0 %v349, 32
  %v351 = vpop.permute.xlu0 %350
  %v352 = vadd.f32 %v349, %v351
  %353 = vrot.lane.b32.xlu0 %v349, 64
  %v354 = vpop.permute.xlu0 %353
  %v355 = vadd.f32 %v352, %v354
  %356 = vrot.lane.b32.xlu0 %v349, 96
  %v357 = vpop.permute.xlu0 %356
  %v358 = vadd.f32 %v355, %v357
  %v359 = vsel %vm169, %v358, 0.0
  %v360 = vrot.slane %v359, 4
  %v361 = vadd.f32 %v359, %v360
  %v362 = vrot.slane %v361, 2
  %v363 = vadd.f32 %v361, %v362
  %v364 = vrot.slane %v363, 1
  %v365 = vadd.f32 %v363, %v364
  %v366 = vmul.f32 %v365, 0.125
  %v367 = vadd.f32 %v366, 0.8
  %v368 = vrsqrt.pop %v367
  %v369 = vmul.f32 %v348, %v368
  %v371 = vlaneseq
  %v372 = vshrl.u32 %v371, 7
  %v373 = vsub.s32 0, %v372
  %v374 = vrot.slane %v329, %v373
  %v376 = vmul.f32 %v369, %v374
  %v378 = vlaneseq
  %v379 = vshrl.u32 %v378, 7
  %v380 = vsub.s32 0, %v379
  %v381 = vrot.slane %v330, %v380
  %v383 = vadd.f32 %v376, %v381
  %v384 = vadd.f32 %v45, %v383
  %vm385 = vcmp.gt.f32.partialorder %v384, 0.0
  %v386 = vmul.f32 %v384, 0.01
  %v387 = vsel %vm385, %v384, %v386
  %v388 = vpack.c.bf16 %v387, %v387
  %v389 = vld [vmem:[%s9] sm:$0xf]
  %v390 = vld [vmem:[%s9 + $0x4] sm:$0xf]
  %v391 = vld [vmem:[%s9 + $0x8] sm:$0xf]
  %v392 = vld [vmem:[%s9 + $0xc] sm:$0xf]
  %v393 = vld [vmem:[%s9 + $0x10] sm:$0xf]
  %v394 = vld [vmem:[%s9 + $0x14] sm:$0xf]
  %v395 = vld [vmem:[%s9 + $0x18] sm:$0xf]
  %v396 = vld [vmem:[%s9 + $0x1c] sm:$0xf]
  %v397 = vld [vmem:[%s9 + $0x20] sm:$0xf]
  %v398 = vld [vmem:[%s9 + $0x24] sm:$0xf]
  %v399 = vld [vmem:[%s9 + $0x28] sm:$0xf]
  %v400 = vld [vmem:[%s9 + $0x2c] sm:$0xf]
  %v401 = vld [vmem:[%s9 + $0x30] sm:$0xf]
  %v402 = vld [vmem:[%s9 + $0x34] sm:$0xf]
  %v403 = vld [vmem:[%s9 + $0x38] sm:$0xf]
  %v404 = vld [vmem:[%s9 + $0x3c] sm:$0xf]
  %v405 = vld [vmem:[%s10] sm:$0x1]
  %v407 = vlaneseq
  %v408 = vshrl.u32 %v407, 7
  %v409 = vsub.s32 0, %v408
  %v410 = vrot.slane %v405, %v409
  %v428 = vunpack.c.l.b16 %v389
  %v429 = vunpack.c.l.b16 %v390
  %v430 = vunpack.c.l.b16 %v391
  %v431 = vunpack.c.l.b16 %v392
  %v432 = vunpack.c.l.b16 %v393
  %v433 = vunpack.c.l.b16 %v394
  %v434 = vunpack.c.l.b16 %v395
  %v435 = vunpack.c.l.b16 %v396
  %v436 = vunpack.c.l.b16 %v397
  %v437 = vunpack.c.l.b16 %v398
  %v438 = vunpack.c.l.b16 %v399
  %v439 = vunpack.c.l.b16 %v400
  %v440 = vunpack.c.l.b16 %v401
  %v441 = vunpack.c.l.b16 %v402
  %v442 = vunpack.c.l.b16 %v403
  %v443 = vunpack.c.l.b16 %v404
  %v444 = vpack.c.b16 %v429, %v428
  %v445 = vpack.c.b16 %v431, %v430
  %v446 = vpack.c.b16 %v433, %v432
  %v447 = vpack.c.b16 %v435, %v434
  %v448 = vpack.c.b16 %v437, %v436
  %v449 = vpack.c.b16 %v439, %v438
  %v450 = vpack.c.b16 %v441, %v440
  %v451 = vpack.c.b16 %v443, %v442
  %460 = vmatprep.subr.bf16.mxu0 0
  %461 = vmatpush1.bf16.msra.mxu0 %v444
  %462 = vmatprep.subr.bf16.mxu0 0
  %463 = vmatpush1.bf16.msra.mxu0 %v445
  %464 = vmatprep.subr.bf16.mxu0 0
  %465 = vmatpush1.bf16.msra.mxu0 %v446
  %466 = vmatprep.subr.bf16.mxu0 0
  %467 = vmatpush1.bf16.msra.mxu0 %v447
  %468 = vmatprep.subr.bf16.mxu0 0
  %469 = vmatpush1.bf16.msra.mxu0 %v448
  %470 = vmatprep.subr.bf16.mxu0 0
  %471 = vmatpush1.bf16.msra.mxu0 %v449
  %472 = vmatprep.subr.bf16.mxu0 0
  %473 = vmatpush1.bf16.msra.mxu0 %v450
  %474 = vmatprep.subr.bf16.mxu0 0
  %475 = vmatpush1.bf16.msra.mxu0 %v451
  %476 = vmatprep.subr.bf16.mxu0 0
  %477 = vmatpush1.bf16.msra.mxu0 0
  %478 = vmatprep.subr.bf16.mxu0 0
  %479 = vmatpush1.bf16.msra.mxu0 0
  %480 = vmatprep.subr.bf16.mxu0 0
  %481 = vmatpush1.bf16.msra.mxu0 0
  %482 = vmatprep.subr.bf16.mxu0 0
  %483 = vmatpush1.bf16.msra.mxu0 0
  %484 = vmatprep.subr.bf16.mxu0 0
  %485 = vmatpush1.bf16.msra.mxu0 0
  %486 = vmatprep.subr.bf16.mxu0 0
  %487 = vmatpush1.bf16.msra.mxu0 0
  %488 = vmatprep.subr.bf16.mxu0 0
  %489 = vmatpush1.bf16.msra.mxu0 0
  %490 = vmatprep.subr.bf16.mxu0 0
  %491 = vmatpush1.bf16.msra.mxu0 0
  %492 = vmatprep.mubr.bf16.mxu0 0
  %493 = vmatmul.mubr.bf16.gmra.mrb[0].mxu0 %v388
  %v494 = vpop.f32.mrb[0].mxu0
  %v495 = vadd.f32 %v410, %v494
  %v496 = vpop.f32.mrb[0].mxu0
  %v497 = vpop.f32.mrb[0].mxu0
  %v498 = vpop.f32.mrb[0].mxu0
  %499 = vdwg.mxu0
  %vm500 = vcmp.gt.f32.partialorder %v495, 0.0
  %v501 = vmul.f32 %v495, 0.01
  %v502 = vsel %vm500, %v495, %v501
  %v503 = vpack.c.bf16 %v502, %v502
  %v504 = vld [vmem:[%s11] sm:$0xf]
  %v505 = vld [vmem:[%s11 + $0x4] sm:$0xf]
  %v506 = vld [vmem:[%s11 + $0x8] sm:$0xf]
  %v507 = vld [vmem:[%s11 + $0xc] sm:$0xf]
  %v508 = vld [vmem:[%s11 + $0x10] sm:$0xf]
  %v509 = vld [vmem:[%s11 + $0x14] sm:$0xf]
  %v510 = vld [vmem:[%s11 + $0x18] sm:$0xf]
  %v511 = vld [vmem:[%s11 + $0x1c] sm:$0xf]
  %v512 = vld [vmem:[%s11 + $0x20] sm:$0xf]
  %v513 = vld [vmem:[%s11 + $0x24] sm:$0xf]
  %v514 = vld [vmem:[%s11 + $0x28] sm:$0xf]
  %v515 = vld [vmem:[%s11 + $0x2c] sm:$0xf]
  %v516 = vld [vmem:[%s11 + $0x30] sm:$0xf]
  %v517 = vld [vmem:[%s11 + $0x34] sm:$0xf]
  %v518 = vld [vmem:[%s11 + $0x38] sm:$0xf]
  %v519 = vld [vmem:[%s11 + $0x3c] sm:$0xf]
  %v520 = vld [vmem:[%s12] sm:$0x1]
  %v522 = vlaneseq
  %v523 = vshrl.u32 %v522, 7
  %v524 = vsub.s32 0, %v523
  %v525 = vrot.slane %v520, %v524
  %v543 = vunpack.c.l.b16 %v504
  %v544 = vunpack.c.l.b16 %v505
  %v545 = vunpack.c.l.b16 %v506
  %v546 = vunpack.c.l.b16 %v507
  %v547 = vunpack.c.l.b16 %v508
  %v548 = vunpack.c.l.b16 %v509
  %v549 = vunpack.c.l.b16 %v510
  %v550 = vunpack.c.l.b16 %v511
  %v551 = vunpack.c.l.b16 %v512
  %v552 = vunpack.c.l.b16 %v513
  %v553 = vunpack.c.l.b16 %v514
  %v554 = vunpack.c.l.b16 %v515
  %v555 = vunpack.c.l.b16 %v516
  %v556 = vunpack.c.l.b16 %v517
  %v557 = vunpack.c.l.b16 %v518
  %v558 = vunpack.c.l.b16 %v519
  %v559 = vpack.c.b16 %v544, %v543
  %v560 = vpack.c.b16 %v546, %v545
  %v561 = vpack.c.b16 %v548, %v547
  %v562 = vpack.c.b16 %v550, %v549
  %v563 = vpack.c.b16 %v552, %v551
  %v564 = vpack.c.b16 %v554, %v553
  %v565 = vpack.c.b16 %v556, %v555
  %v566 = vpack.c.b16 %v558, %v557
  %575 = vmatprep.subr.bf16.mxu0 0
  %576 = vmatpush1.bf16.msra.mxu0 %v559
  %577 = vmatprep.subr.bf16.mxu0 0
  %578 = vmatpush1.bf16.msra.mxu0 %v560
  %579 = vmatprep.subr.bf16.mxu0 0
  %580 = vmatpush1.bf16.msra.mxu0 %v561
  %581 = vmatprep.subr.bf16.mxu0 0
  %582 = vmatpush1.bf16.msra.mxu0 %v562
  %583 = vmatprep.subr.bf16.mxu0 0
  %584 = vmatpush1.bf16.msra.mxu0 %v563
  %585 = vmatprep.subr.bf16.mxu0 0
  %586 = vmatpush1.bf16.msra.mxu0 %v564
  %587 = vmatprep.subr.bf16.mxu0 0
  %588 = vmatpush1.bf16.msra.mxu0 %v565
  %589 = vmatprep.subr.bf16.mxu0 0
  %590 = vmatpush1.bf16.msra.mxu0 %v566
  %591 = vmatprep.subr.bf16.mxu0 0
  %592 = vmatpush1.bf16.msra.mxu0 0
  %593 = vmatprep.subr.bf16.mxu0 0
  %594 = vmatpush1.bf16.msra.mxu0 0
  %595 = vmatprep.subr.bf16.mxu0 0
  %596 = vmatpush1.bf16.msra.mxu0 0
  %597 = vmatprep.subr.bf16.mxu0 0
  %598 = vmatpush1.bf16.msra.mxu0 0
  %599 = vmatprep.subr.bf16.mxu0 0
  %600 = vmatpush1.bf16.msra.mxu0 0
  %601 = vmatprep.subr.bf16.mxu0 0
  %602 = vmatpush1.bf16.msra.mxu0 0
  %603 = vmatprep.subr.bf16.mxu0 0
  %604 = vmatpush1.bf16.msra.mxu0 0
  %605 = vmatprep.subr.bf16.mxu0 0
  %606 = vmatpush1.bf16.msra.mxu0 0
  %607 = vmatprep.mubr.bf16.mxu0 0
  %608 = vmatmul.mubr.bf16.gmra.mrb[0].mxu0 %v503
  %v609 = vpop.f32.mrb[0].mxu0
  %v610 = vadd.f32 %v525, %v609
  %v611 = vpop.f32.mrb[0].mxu0
  %v612 = vpop.f32.mrb[0].mxu0
  %v613 = vpop.f32.mrb[0].mxu0
  %614 = vdwg.mxu0
  %615 = vst [vmem:[%s13] sm:$0x3] %v610
  // Predicated region
  $region54: #{_lambda_.7} parent=0 // pred_check
    _
  $region55: #{_lambda_.7} parent=0 // pred_check_branch
    %617 = sbr.rel (0) target = $region57
  $region56: #{_lambda_.7} parent=0 // pred_region
    _
  $region57: #{_lambda_.7} parent=0 // pred_fallthru
    _
  // Predicated region
  $region58: #{_lambda_.7} parent=0 // pred_check
    _
  $region59: #{_lambda_.7} parent=0 // pred_check_branch
    %619 = sbr.rel (0) target = $region61
  $region60: #{_lambda_.7} parent=0 // pred_region
    _
  $region61: #{_lambda_.7} parent=0 // pred_fallthru
    _

</llo_original>
